<compile_context>
chip_gen: v7x
topology: tpu7x:2x2x1
jax: 0.10.0
libtpu: 0.0.40
codegen_flags: <defaults>
</compile_context>

<pallas_src>
import functools
import math

import jax
import jax.numpy as jnp
from jax.experimental import pallas as pl
from jax.experimental.pallas import tpu as pltpu


def _detect_vmem_limit():
    """3/4 of physical VMEM: ~48 MiB on v7x (64 MiB), ~96 MiB on v5e/v6e."""
    try:
        info = pltpu.get_tpu_info()
        cap = int(getattr(info, "vmem_capacity_bytes", 0))
        if cap > 0:
            return (cap // 4) * 3
    except Exception:
        pass
    return 48 * 1024 * 1024                           # safe on every generation


_VMEM_LIMIT = _detect_vmem_limit()


# ----------------------------------------------------------------------------
# Pallas kernels
# ----------------------------------------------------------------------------
def _conv_tap_kernel(*refs, kd1, Do, Ro, relu, want_stats):
    """One batch element per grid step; depth taps unrolled in the body.

    refs = (x_ref, w_ref, b_ref, o_ref[, s_ref])
      x_ref : (1, (Do+kd1-1)*Ro, K3) bf16  folded rows (kh/kw taps in lanes)
      w_ref : (kd1, K3, Cp)          bf16  VMEM-resident weights (all taps)
      b_ref : (1, Cp)                f32   bias (lane-padded to 128)
      o_ref : (1, Do*Ro, Cp)         bf16  conv output rows (lane-dense)
      s_ref : (1, 2, Cp)             f32   [sum, sum-of-squares] of this block
    """
    if want_stats:
        x_ref, w_ref, b_ref, o_ref, s_ref = refs
    else:
        x_ref, w_ref, b_ref, o_ref = refs
        s_ref = None

    m = Do * Ro
    # vreg f32 accumulator; one lane-dense MXU matmul per depth tap.
    # NOTE: tap slice starts a1*Ro are multiples of 16 at these shapes
    # (Ho*Wo in {64, 16}) so the bf16 sublane packing stays aligned.
    acc = jnp.dot(x_ref[0, 0:m, :], w_ref[0],
                  preferred_element_type=jnp.float32)
    for a1 in range(1, kd1):                          # static unroll (kd1 <= 3)
        acc = acc + jnp.dot(x_ref[0, a1 * Ro:a1 * Ro + m, :], w_ref[a1],
                            preferred_element_type=jnp.float32)

    r = acc + b_ref[...]
    if relu:
        r = jnp.maximum(r, 0.0)
    o_ref[0] = r.astype(o_ref.dtype)
    if want_stats:
        s_ref[0] = jnp.concatenate(
            [jnp.sum(r, axis=0, keepdims=True),
             jnp.sum(r * r, axis=0, keepdims=True)], axis=0)


def _bn_apply_kernel(y_ref, sc_ref, sh_ref, o_ref):
    # y_ref: (TR, Cp) bf16; sc/sh: (1, Cp) f32; o_ref: (TR, Cp) bf16
    y = y_ref[...].astype(jnp.float32)
    o_ref[...] = (y * sc_ref[...] + sh_ref[...]).astype(o_ref.dtype)


# ----------------------------------------------------------------------------
# SamePadConv3d: plain-JAX layout prep + Pallas tap-accumulation matmul
# ----------------------------------------------------------------------------
def _conv3d_flat(x, w, b, strides, *, relu, want_stats):
    """SamePadConv3d forward.

    x: (N, D, H, W, C) with C >= Cin (extra lane-padding channels ignored);
    w: (Cout, Cin, kd, kh, kw).

    Returns (flat (N, Do*Ho*Wo, Cp) bf16, partial_stats or None, geometry).
    """
    N, D, H, W, _ = x.shape
    Cout, Cin, kd, kh, kw = w.shape
    Cp = ((Cout + 127) // 128) * 128                  # lane-dense output width

    # --- plain-JAX layout prep (no full im2col) -----------------------------
    # Channel slice (undoes the previous layer's lane padding, fuses into the
    # pad), PyTorch-style asymmetric "same" pad, stride-phase fold
    # (space-to-depth) turning every stride-2 dim into stride-1, and a fold of
    # the kh*kw height/width taps into the lane axis.  Depth taps stay as an
    # in-kernel accumulation loop, so the prep blow-up is ~kh1*kw1 (4-9x of a
    # downsampled tensor), not kd*kh*kw (27-64x).
    # TODO(synk): for large spatial shapes the kh/kw fold should move into the
    # kernel as shifted row slices to cut prep HBM traffic further.
    x = x[..., :Cin].astype(jnp.bfloat16)

    pads = [(0, 0)]
    folds, ktaps, outs = [], [], []
    for size, k, s in zip((D, H, W), (kd, kh, kw), strides):
        assert s in (1, 2) and k % s == 0, (k, s)
        p = k - s                                     # PyTorch SamePadConv3d
        lo, hi = p // 2 + p % 2, p // 2
        extra = (-(size + lo + hi)) % s               # make the fold divide
        pads.append((lo, hi + extra))                 # (extra tail never read)
        folds.append(s)
        ktaps.append(k // s)
        outs.append((size - s) // s + 1)
    pads.append((0, 0))
    xp = jnp.pad(x, pads)

    fd, fh, fw = folds
    kd1, kh1, kw1 = ktaps
    Do, Ho, Wo = outs
    Dp, Hp, Wp = xp.shape[1:4]
    D1, H1, W1 = Dp // fd, Hp // fh, Wp // fw
    C1 = fd * fh * fw * Cin
    K3 = kh1 * kw1 * C1
    Ro = Ho * Wo
    D1u = Do + kd1 - 1                                # depth slices actually read

    # stride-phase fold (space-to-depth): stride-s conv -> stride-1 conv
    xs = xp.reshape(N, D1, fd, H1, fh, W1, fw, Cin)
    xs = xs.transpose(0, 1, 3, 5, 2, 4, 6, 7).reshape(N, D1, H1, W1, C1)
    # fold the kh1*kw1 taps into the lane axis; flatten (depth, H, W) to rows
    xw = jnp.concatenate(
        [xs[:, :D1u, bh:bh + Ho, bw:bw + Wo, :]
         for bh in range(kh1) for bw in range(kw1)], axis=-1)
    xf = xw.reshape(N, D1u * Ro, K3)

    # weight (Cout, Cin, kd, kh, kw) -> (kd1, K3, Cp) matching xf's lane order
    wr = w.reshape(Cout, Cin, kd1, fd, kh1, fh, kw1, fw)
    wr = wr.transpose(2, 4, 6, 3, 5, 7, 1, 0).reshape(kd1, K3, Cout)
    wm = jnp.pad(wr, ((0, 0), (0, 0), (0, Cp - Cout))).astype(jnp.bfloat16)
    bp = jnp.pad(b.astype(jnp.float32), (0, Cp - Cout)).reshape(1, Cp)

    kernel = functools.partial(_conv_tap_kernel, kd1=kd1, Do=Do, Ro=Ro,
                               relu=relu, want_stats=want_stats)

    out_shape = [jax.ShapeDtypeStruct((N, Do * Ro, Cp), jnp.bfloat16)]
    out_specs = [pl.BlockSpec((1, Do * Ro, Cp), lambda n: (n, 0, 0))]
    if want_stats:
        out_shape.append(jax.ShapeDtypeStruct((N, 2, Cp), jnp.float32))
        out_specs.append(pl.BlockSpec((1, 2, Cp), lambda n: (n, 0, 0)))

    # TODO(synk): for very large Do*Ho*Wo (>~20K rows on v7x's 64 MiB VMEM)
    # this per-batch-element block must be split over a second "parallel"
    # grid axis (depth-tap halo rows via pl.Element offsets or a manual DMA);
    # not needed at these shapes.
    res = pl.pallas_call(
        kernel,
        grid=(N,),
        in_specs=[
            pl.BlockSpec((1, D1u * Ro, K3), lambda n: (n, 0, 0)),
            pl.BlockSpec((kd1, K3, Cp), lambda n: (0, 0, 0)),   # VMEM-resident
            pl.BlockSpec((1, Cp), lambda n: (0, 0)),
        ],
        out_specs=tuple(out_specs) if want_stats else out_specs[0],
        out_shape=tuple(out_shape) if want_stats else out_shape[0],
        compiler_params=pltpu.CompilerParams(
            dimension_semantics=("parallel",),
            vmem_limit_bytes=_VMEM_LIMIT),
    )(xf, wm, bp)

    flat, pstats = (res if want_stats else (res, None))
    return flat, pstats, (N, Do, Ho, Wo, Cout, Cp)


def same_pad_conv3d(x, w, b, strides, *, relu):
    flat, _, (N, Do, Ho, Wo, _Cout, Cp) = _conv3d_flat(
        x, w, b, strides, relu=relu, want_stats=False)
    # Keep the lane-padded Cp channels between layers (padded channels are
    # exact zeros); the next layer slices them off inside its fused prep.
    return flat.reshape(N, Do, Ho, Wo, Cp)


def _row_tile(rows):
    if rows <= 2048:
        return rows
    for t in (2048, 1024, 512, 256, 128, 64, 32, 16, 8):
        if rows % t == 0:
            return t
    return rows


def conv_last_batchnorm(x, w, b, gamma, beta, *, eps=1e-5):
    """conv_last with BN statistics fused into its epilogue, then a row-tiled
    normalize kernel.  Training-mode BatchNorm (biased batch variance)."""
    flat, pstats, (N, Do, Ho, Wo, Cout, Cp) = _conv3d_flat(
        x, w, b, (1, 1, 1), relu=False, want_stats=True)

    m = N * Do * Ho * Wo
    tot = jnp.sum(pstats, axis=0)                     # (2, Cp) f32, tiny
    mean = tot[0, :Cout] / m
    var = jnp.maximum(tot[1, :Cout] / m - mean * mean, 0.0)   # biased variance
    inv = jax.lax.rsqrt(var + eps)
    scale = gamma.astype(jnp.float32) * inv
    shift = beta.astype(jnp.float32) - mean * scale
    scale_p = jnp.zeros((1, Cp), jnp.float32).at[0, :Cout].set(scale)
    shift_p = jnp.zeros((1, Cp), jnp.float32).at[0, :Cout].set(shift)

    rows = N * Do * Ho * Wo
    tr = _row_tile(rows)
    y = flat.reshape(rows, Cp)
    out = pl.pallas_call(
        _bn_apply_kernel,
        out_shape=jax.ShapeDtypeStruct((rows, Cp), jnp.bfloat16),
        grid=(rows // tr,),
        in_specs=[
            pl.BlockSpec((tr, Cp), lambda i: (i, 0)),
            pl.BlockSpec((1, Cp), lambda i: (0, 0)),
            pl.BlockSpec((1, Cp), lambda i: (0, 0)),
        ],
        out_specs=pl.BlockSpec((tr, Cp), lambda i: (i, 0)),
        compiler_params=pltpu.CompilerParams(
            dimension_semantics=("parallel",),
            vmem_limit_bytes=_VMEM_LIMIT),
    )(y, scale_p, shift_p)
    return out.reshape(N, Do, Ho, Wo, Cp)


# ----------------------------------------------------------------------------
# Encoder plumbing
# ----------------------------------------------------------------------------
def init_encoder_params(key, n_hiddens, downsample):
    ntd = [int(math.log2(d)) for d in downsample]
    max_ds = max(ntd)
    convs, strides = [], []
    in_channels = 3
    for i in range(max_ds):
        in_channels = 3 if i == 0 else n_hiddens
        stride = tuple(2 if d > 0 else 1 for d in ntd)
        key, k1, k2 = jax.random.split(key, 3)
        w = 0.05 * jax.random.normal(k1, (n_hiddens, in_channels, 4, 4, 4),
                                     jnp.float32)
        b = 0.05 * jax.random.normal(k2, (n_hiddens,), jnp.float32)
        convs.append({"w": w, "b": b})
        strides.append(stride)
        ntd = [d - 1 for d in ntd]
    # conv_last faithfully reuses `in_channels` from the last loop iteration
    key, k1, k2, k3, k4 = jax.random.split(key, 5)
    wl = 0.05 * jax.random.normal(k1, (n_hiddens, in_channels, 3, 3, 3),
                                  jnp.float32)
    bl = 0.05 * jax.random.normal(k2, (n_hiddens,), jnp.float32)
    gamma = 1.0 + 0.1 * jax.random.normal(k3, (n_hiddens,), jnp.float32)
    beta = 0.1 * jax.random.normal(k4, (n_hiddens,), jnp.float32)
    params = {"convs": convs, "wl": wl, "bl": bl, "gamma": gamma, "beta": beta}
    return params, tuple(strides)


def encoder_forward(params, x_ncdhw, strides):
    # NCDHW (PyTorch) -> NDHWC (channels on the 128-wide lane axis)
    h = jnp.transpose(x_ncdhw, (0, 2, 3, 4, 1))
    for layer, st in zip(params["convs"], strides):
        h = same_pad_conv3d(h, layer["w"], layer["b"], st, relu=True)
    # TODO(synk): BatchNorm running-stat updates (a training side effect) are
    # not reproduced; only the training-mode forward normalization is.
    h = conv_last_batchnorm(h, params["wl"], params["bl"],
                            params["gamma"], params["beta"])
    n_hid = params["gamma"].shape[0]
    h = h[..., :n_hid].astype(jnp.float32)            # drop lane padding
    return jnp.transpose(h, (0, 4, 1, 2, 3))          # back to NCDHW


# ----------------------------------------------------------------------------
# Pure-JAX reference (numerical sanity check)
# ----------------------------------------------------------------------------
def _ref_conv(h, w, b, strides):
    kd, kh, kw = w.shape[2:]
    pads = []
    for k, s in zip((kd, kh, kw), strides):
        p = k - s
        pads.append((p // 2 + p % 2, p // 2))
    wt = jnp.transpose(w, (2, 3, 4, 1, 0))            # DHWIO
    out = jax.lax.conv_general_dilated(
        h, wt, window_strides=strides, padding=pads,
        dimension_numbers=("NDHWC", "DHWIO", "NDHWC"))
    return out + b


def reference_forward(params, x_ncdhw, strides):
    h = jnp.transpose(x_ncdhw, (0, 2, 3, 4, 1))
    for layer, st in zip(params["convs"], strides):
        h = jax.nn.relu(_ref_conv(h, layer["w"], layer["b"], st))
    h = _ref_conv(h, params["wl"], params["bl"], (1, 1, 1))
    mean = jnp.mean(h, axis=(0, 1, 2, 3), keepdims=True)
    var = jnp.mean(jnp.square(h - mean), axis=(0, 1, 2, 3), keepdims=True)
    h = (h - mean) * jax.lax.rsqrt(var + 1e-5) * params["gamma"] + params["beta"]
    return jnp.transpose(h, (0, 4, 1, 2, 3))


# ----------------------------------------------------------------------------
if __name__ == "__main__":
    key = jax.random.PRNGKey(0)
    n_hiddens = 16
    downsample = (4, 4, 4)          # -> two stride-2 convs + conv_last(k=3)

    key, kp, kx = jax.random.split(key, 3)
    params, strides = init_encoder_params(kp, n_hiddens, downsample)

    # PyTorch-style NCDHW input: (batch=2, C=3, D=8, H=16, W=16)
    x = jax.random.normal(kx, (2, 3, 8, 16, 16), jnp.float32)

    fwd = jax.jit(encoder_forward, static_argnums=2)
    out = jax.block_until_ready(fwd(params, x, strides))

    assert out.shape == (2, n_hiddens, 2, 4, 4), out.shape

    ref = jax.block_until_ready(reference_forward(params, x, strides))
    max_err = float(jnp.max(jnp.abs(out - ref)))
    assert jnp.allclose(out, ref, atol=5e-2, rtol=5e-2), max_err

    print("KERNEL_OK")
</pallas_src>

<mosaic_0001>
module attributes {stable_mosaic.version = 11 : i64} {
  func.func @_conv_tap_kernel(%arg0: i32, %arg1: memref<1x320x96xbf16, #tpu.memory_space<vmem>>, %arg2: memref<2x96x128xbf16, #tpu.memory_space<vmem>>, %arg3: memref<1x128xf32, #tpu.memory_space<vmem>>, %arg4: memref<1x256x128xbf16, #tpu.memory_space<vmem>>) attributes {dimension_semantics = [#tpu.dimension_semantics<parallel>], iteration_bounds = array<i64: 2>, scalar_prefetch = 0 : i64, scratch_operands = 0 : i64, tpu.core_type = #tpu.core_type<tc>, window_params = [{transform_indices = @transform_0, window_bounds = array<i64: 1, 320, 96>}, {pipeline_mode = #tpu.pipeline_mode<synchronous>, transform_indices = @transform_1, window_bounds = array<i64: 2, 96, 128>}, {pipeline_mode = #tpu.pipeline_mode<synchronous>, transform_indices = @transform_2, window_bounds = array<i64: 1, 128>}, {transform_indices = @transform_3, window_bounds = array<i64: 1, 256, 128>}]} {
    %c0 = arith.constant 0 : index
    %c0_0 = arith.constant 0 : index
    %c0_1 = arith.constant 0 : index
    %0 = vector.load %arg1[%c0, %c0_0, %c0_1] : memref<1x320x96xbf16, #tpu.memory_space<vmem>>, vector<1x256x96xbf16>
    %1 = vector.shape_cast %0 : vector<1x256x96xbf16> to vector<256x96xbf16>
    %c0_2 = arith.constant 0 : index
    %c0_3 = arith.constant 0 : index
    %c0_4 = arith.constant 0 : index
    %2 = vector.load %arg2[%c0_2, %c0_3, %c0_4] : memref<2x96x128xbf16, #tpu.memory_space<vmem>>, vector<1x96x128xbf16>
    %3 = vector.shape_cast %2 : vector<1x96x128xbf16> to vector<96x128xbf16>
    %cst = arith.constant dense<0.000000e+00> : vector<256x128xf32>
    %4 = tpu.matmul %1, %3, %cst {dimension_numbers = #tpu.dot_dimension_numbers<[1], [0], [0], [1], [0, 0, 1, 1], [], []>} : vector<256x96xbf16>, vector<96x128xbf16>, vector<256x128xf32> -> vector<256x128xf32>
    %c0_5 = arith.constant 0 : index
    %c64 = arith.constant 64 : index
    %c0_6 = arith.constant 0 : index
    %5 = vector.load %arg1[%c0_5, %c64, %c0_6] : memref<1x320x96xbf16, #tpu.memory_space<vmem>>, vector<1x256x96xbf16>
    %6 = vector.shape_cast %5 : vector<1x256x96xbf16> to vector<256x96xbf16>
    %c1 = arith.constant 1 : index
    %c0_7 = arith.constant 0 : index
    %c0_8 = arith.constant 0 : index
    %7 = vector.load %arg2[%c1, %c0_7, %c0_8] : memref<2x96x128xbf16, #tpu.memory_space<vmem>>, vector<1x96x128xbf16>
    %8 = vector.shape_cast %7 : vector<1x96x128xbf16> to vector<96x128xbf16>
    %cst_9 = arith.constant dense<0.000000e+00> : vector<256x128xf32>
    %9 = tpu.matmul %6, %8, %cst_9 {dimension_numbers = #tpu.dot_dimension_numbers<[1], [0], [0], [1], [0, 0, 1, 1], [], []>} : vector<256x96xbf16>, vector<96x128xbf16>, vector<256x128xf32> -> vector<256x128xf32>
    %10 = arith.addf %4, %9 : vector<256x128xf32>
    %c0_10 = arith.constant 0 : index
    %c0_11 = arith.constant 0 : index
    %11 = vector.load %arg3[%c0_10, %c0_11] : memref<1x128xf32, #tpu.memory_space<vmem>>, vector<1x128xf32>
    %12 = vector.broadcast %11 : vector<1x128xf32> to vector<256x128xf32>
    %13 = arith.addf %10, %12 : vector<256x128xf32>
    %cst_12 = arith.constant 0.000000e+00 : f32
    %14 = vector.broadcast %cst_12 : f32 to vector<256x128xf32>
    %15 = arith.maximumf %13, %14 : vector<256x128xf32>
    %16 = arith.truncf %15 : vector<256x128xf32> to vector<256x128xbf16>
    %c0_13 = arith.constant 0 : index
    %c0_14 = arith.constant 0 : index
    %c0_15 = arith.constant 0 : index
    %17 = vector.load %arg4[%c0_13, %c0_14, %c0_15] : memref<1x256x128xbf16, #tpu.memory_space<vmem>>, vector<1x256x128xbf16>
    %18 = vector.shape_cast %17 : vector<1x256x128xbf16> to vector<256x128xbf16>
    %19 = vector.shape_cast %16 : vector<256x128xbf16> to vector<1x256x128xbf16>
    tpu.vector_store %arg4[%c0_13, %c0_14, %c0_15], %19 {strides = array<i32>} : memref<1x256x128xbf16, #tpu.memory_space<vmem>>, vector<1x256x128xbf16>,
    return
  }
  func.func @transform_0(%arg0: i32) -> (i32, i32, i32) {
    %c0_i32 = arith.constant 0 : i32
    %c0_i32_0 = arith.constant 0 : i32
    %c0_i32_1 = arith.constant 0 : i32
    return %arg0, %c0_i32, %c0_i32_0 : i32, i32, i32
  }
  func.func @transform_1(%arg0: i32) -> (i32, i32, i32) {
    %c0_i32 = arith.constant 0 : i32
    %c0_i32_0 = arith.constant 0 : i32
    %c0_i32_1 = arith.constant 0 : i32
    %c0_i32_2 = arith.constant 0 : i32
    return %c0_i32, %c0_i32_0, %c0_i32_1 : i32, i32, i32
  }
  func.func @transform_2(%arg0: i32) -> (i32, i32) {
    %c0_i32 = arith.constant 0 : i32
    %c0_i32_0 = arith.constant 0 : i32
    %c0_i32_1 = arith.constant 0 : i32
    return %c0_i32, %c0_i32_0 : i32, i32
  }
  func.func @transform_3(%arg0: i32) -> (i32, i32, i32) {
    %c0_i32 = arith.constant 0 : i32
    %c0_i32_0 = arith.constant 0 : i32
    %c0_i32_1 = arith.constant 0 : i32
    return %arg0, %c0_i32, %c0_i32_0 : i32, i32, i32
  }
}

module attributes {stable_mosaic.version = 11 : i64} {
  func.func @_conv_tap_kernel(%arg0: i32, %arg1: memref<1x48x512xbf16, #tpu.memory_space<vmem>>, %arg2: memref<2x512x128xbf16, #tpu.memory_space<vmem>>, %arg3: memref<1x128xf32, #tpu.memory_space<vmem>>, %arg4: memref<1x32x128xbf16, #tpu.memory_space<vmem>>) attributes {dimension_semantics = [#tpu.dimension_semantics<parallel>], iteration_bounds = array<i64: 2>, scalar_prefetch = 0 : i64, scratch_operands = 0 : i64, tpu.core_type = #tpu.core_type<tc>, window_params = [{transform_indices = @transform_0, window_bounds = array<i64: 1, 48, 512>}, {pipeline_mode = #tpu.pipeline_mode<synchronous>, transform_indices = @transform_1, window_bounds = array<i64: 2, 512, 128>}, {pipeline_mode = #tpu.pipeline_mode<synchronous>, transform_indices = @transform_2, window_bounds = array<i64: 1, 128>}, {transform_indices = @transform_3, window_bounds = array<i64: 1, 32, 128>}]} {
    %c0 = arith.constant 0 : index
    %c0_0 = arith.constant 0 : index
    %c0_1 = arith.constant 0 : index
    %0 = vector.load %arg1[%c0, %c0_0, %c0_1] : memref<1x48x512xbf16, #tpu.memory_space<vmem>>, vector<1x32x512xbf16>
    %1 = vector.shape_cast %0 : vector<1x32x512xbf16> to vector<32x512xbf16>
    %c0_2 = arith.constant 0 : index
    %c0_3 = arith.constant 0 : index
    %c0_4 = arith.constant 0 : index
    %2 = vector.load %arg2[%c0_2, %c0_3, %c0_4] : memref<2x512x128xbf16, #tpu.memory_space<vmem>>, vector<1x512x128xbf16>
    %3 = vector.shape_cast %2 : vector<1x512x128xbf16> to vector<512x128xbf16>
    %cst = arith.constant dense<0.000000e+00> : vector<32x128xf32>
    %4 = tpu.matmul %1, %3, %cst {dimension_numbers = #tpu.dot_dimension_numbers<[1], [0], [0], [1], [0, 0, 1, 1], [], []>} : vector<32x512xbf16>, vector<512x128xbf16>, vector<32x128xf32> -> vector<32x128xf32>
    %c0_5 = arith.constant 0 : index
    %c16 = arith.constant 16 : index
    %c0_6 = arith.constant 0 : index
    %5 = vector.load %arg1[%c0_5, %c16, %c0_6] : memref<1x48x512xbf16, #tpu.memory_space<vmem>>, vector<1x32x512xbf16>
    %6 = vector.shape_cast %5 : vector<1x32x512xbf16> to vector<32x512xbf16>
    %c1 = arith.constant 1 : index
    %c0_7 = arith.constant 0 : index
    %c0_8 = arith.constant 0 : index
    %7 = vector.load %arg2[%c1, %c0_7, %c0_8] : memref<2x512x128xbf16, #tpu.memory_space<vmem>>, vector<1x512x128xbf16>
    %8 = vector.shape_cast %7 : vector<1x512x128xbf16> to vector<512x128xbf16>
    %cst_9 = arith.constant dense<0.000000e+00> : vector<32x128xf32>
    %9 = tpu.matmul %6, %8, %cst_9 {dimension_numbers = #tpu.dot_dimension_numbers<[1], [0], [0], [1], [0, 0, 1, 1], [], []>} : vector<32x512xbf16>, vector<512x128xbf16>, vector<32x128xf32> -> vector<32x128xf32>
    %10 = arith.addf %4, %9 : vector<32x128xf32>
    %c0_10 = arith.constant 0 : index
    %c0_11 = arith.constant 0 : index
    %11 = vector.load %arg3[%c0_10, %c0_11] : memref<1x128xf32, #tpu.memory_space<vmem>>, vector<1x128xf32>
    %12 = vector.broadcast %11 : vector<1x128xf32> to vector<32x128xf32>
    %13 = arith.addf %10, %12 : vector<32x128xf32>
    %cst_12 = arith.constant 0.000000e+00 : f32
    %14 = vector.broadcast %cst_12 : f32 to vector<32x128xf32>
    %15 = arith.maximumf %13, %14 : vector<32x128xf32>
    %16 = arith.truncf %15 : vector<32x128xf32> to vector<32x128xbf16>
    %c0_13 = arith.constant 0 : index
    %c0_14 = arith.constant 0 : index
    %c0_15 = arith.constant 0 : index
    %17 = vector.load %arg4[%c0_13, %c0_14, %c0_15] : memref<1x32x128xbf16, #tpu.memory_space<vmem>>, vector<1x32x128xbf16>
    %18 = vector.shape_cast %17 : vector<1x32x128xbf16> to vector<32x128xbf16>
    %19 = vector.shape_cast %16 : vector<32x128xbf16> to vector<1x32x128xbf16>
    tpu.vector_store %arg4[%c0_13, %c0_14, %c0_15], %19 {strides = array<i32>} : memref<1x32x128xbf16, #tpu.memory_space<vmem>>, vector<1x32x128xbf16>,
    return
  }
  func.func @transform_0(%arg0: i32) -> (i32, i32, i32) {
    %c0_i32 = arith.constant 0 : i32
    %c0_i32_0 = arith.constant 0 : i32
    %c0_i32_1 = arith.constant 0 : i32
    return %arg0, %c0_i32, %c0_i32_0 : i32, i32, i32
  }
  func.func @transform_1(%arg0: i32) -> (i32, i32, i32) {
    %c0_i32 = arith.constant 0 : i32
    %c0_i32_0 = arith.constant 0 : i32
    %c0_i32_1 = arith.constant 0 : i32
    %c0_i32_2 = arith.constant 0 : i32
    return %c0_i32, %c0_i32_0, %c0_i32_1 : i32, i32, i32
  }
  func.func @transform_2(%arg0: i32) -> (i32, i32) {
    %c0_i32 = arith.constant 0 : i32
    %c0_i32_0 = arith.constant 0 : i32
    %c0_i32_1 = arith.constant 0 : i32
    return %c0_i32, %c0_i32_0 : i32, i32
  }
  func.func @transform_3(%arg0: i32) -> (i32, i32, i32) {
    %c0_i32 = arith.constant 0 : i32
    %c0_i32_0 = arith.constant 0 : i32
    %c0_i32_1 = arith.constant 0 : i32
    return %arg0, %c0_i32, %c0_i32_0 : i32, i32, i32
  }
}

module attributes {stable_mosaic.version = 11 : i64} {
  func.func @_conv_tap_kernel(%arg0: i32, %arg1: memref<1x64x144xbf16, #tpu.memory_space<vmem>>, %arg2: memref<3x144x128xbf16, #tpu.memory_space<vmem>>, %arg3: memref<1x128xf32, #tpu.memory_space<vmem>>, %arg4: memref<1x32x128xbf16, #tpu.memory_space<vmem>>, %arg5: memref<1x2x128xf32, #tpu.memory_space<vmem>>) attributes {dimension_semantics = [#tpu.dimension_semantics<parallel>], iteration_bounds = array<i64: 2>, scalar_prefetch = 0 : i64, scratch_operands = 0 : i64, tpu.core_type = #tpu.core_type<tc>, window_params = [{transform_indices = @transform_0, window_bounds = array<i64: 1, 64, 144>}, {pipeline_mode = #tpu.pipeline_mode<synchronous>, transform_indices = @transform_1, window_bounds = array<i64: 3, 144, 128>}, {pipeline_mode = #tpu.pipeline_mode<synchronous>, transform_indices = @transform_2, window_bounds = array<i64: 1, 128>}, {transform_indices = @transform_3, window_bounds = array<i64: 1, 32, 128>}, {transform_indices = @transform_4, window_bounds = array<i64: 1, 2, 128>}]} {
    %c0 = arith.constant 0 : index
    %c0_0 = arith.constant 0 : index
    %c0_1 = arith.constant 0 : index
    %0 = vector.load %arg1[%c0, %c0_0, %c0_1] : memref<1x64x144xbf16, #tpu.memory_space<vmem>>, vector<1x32x144xbf16>
    %1 = vector.shape_cast %0 : vector<1x32x144xbf16> to vector<32x144xbf16>
    %c0_2 = arith.constant 0 : index
    %c0_3 = arith.constant 0 : index
    %c0_4 = arith.constant 0 : index
    %2 = vector.load %arg2[%c0_2, %c0_3, %c0_4] : memref<3x144x128xbf16, #tpu.memory_space<vmem>>, vector<1x144x128xbf16>
    %3 = vector.shape_cast %2 : vector<1x144x128xbf16> to vector<144x128xbf16>
    %cst = arith.constant dense<0.000000e+00> : vector<32x128xf32>
    %4 = tpu.matmul %1, %3, %cst {dimension_numbers = #tpu.dot_dimension_numbers<[1], [0], [0], [1], [0, 0, 1, 1], [], []>} : vector<32x144xbf16>, vector<144x128xbf16>, vector<32x128xf32> -> vector<32x128xf32>
    %c0_5 = arith.constant 0 : index
    %c16 = arith.constant 16 : index
    %c0_6 = arith.constant 0 : index
    %5 = vector.load %arg1[%c0_5, %c16, %c0_6] : memref<1x64x144xbf16, #tpu.memory_space<vmem>>, vector<1x32x144xbf16>
    %6 = vector.shape_cast %5 : vector<1x32x144xbf16> to vector<32x144xbf16>
    %c1 = arith.constant 1 : index
    %c0_7 = arith.constant 0 : index
    %c0_8 = arith.constant 0 : index
    %7 = vector.load %arg2[%c1, %c0_7, %c0_8] : memref<3x144x128xbf16, #tpu.memory_space<vmem>>, vector<1x144x128xbf16>
    %8 = vector.shape_cast %7 : vector<1x144x128xbf16> to vector<144x128xbf16>
    %cst_9 = arith.constant dense<0.000000e+00> : vector<32x128xf32>
    %9 = tpu.matmul %6, %8, %cst_9 {dimension_numbers = #tpu.dot_dimension_numbers<[1], [0], [0], [1], [0, 0, 1, 1], [], []>} : vector<32x144xbf16>, vector<144x128xbf16>, vector<32x128xf32> -> vector<32x128xf32>
    %10 = arith.addf %4, %9 : vector<32x128xf32>
    %c0_10 = arith.constant 0 : index
    %c32 = arith.constant 32 : index
    %c0_11 = arith.constant 0 : index
    %11 = vector.load %arg1[%c0_10, %c32, %c0_11] : memref<1x64x144xbf16, #tpu.memory_space<vmem>>, vector<1x32x144xbf16>
    %12 = vector.shape_cast %11 : vector<1x32x144xbf16> to vector<32x144xbf16>
    %c2 = arith.constant 2 : index
    %c0_12 = arith.constant 0 : index
    %c0_13 = arith.constant 0 : index
    %13 = vector.load %arg2[%c2, %c0_12, %c0_13] : memref<3x144x128xbf16, #tpu.memory_space<vmem>>, vector<1x144x128xbf16>
    %14 = vector.shape_cast %13 : vector<1x144x128xbf16> to vector<144x128xbf16>
    %cst_14 = arith.constant dense<0.000000e+00> : vector<32x128xf32>
    %15 = tpu.matmul %12, %14, %cst_14 {dimension_numbers = #tpu.dot_dimension_numbers<[1], [0], [0], [1], [0, 0, 1, 1], [], []>} : vector<32x144xbf16>, vector<144x128xbf16>, vector<32x128xf32> -> vector<32x128xf32>
    %16 = arith.addf %10, %15 : vector<32x128xf32>
    %c0_15 = arith.constant 0 : index
    %c0_16 = arith.constant 0 : index
    %17 = vector.load %arg3[%c0_15, %c0_16] : memref<1x128xf32, #tpu.memory_space<vmem>>, vector<1x128xf32>
    %18 = vector.broadcast %17 : vector<1x128xf32> to vector<32x128xf32>
    %19 = arith.addf %16, %18 : vector<32x128xf32>
    %20 = arith.truncf %19 : vector<32x128xf32> to vector<32x128xbf16>
    %c0_17 = arith.constant 0 : index
    %c0_18 = arith.constant 0 : index
    %c0_19 = arith.constant 0 : index
    %21 = vector.load %arg4[%c0_17, %c0_18, %c0_19] : memref<1x32x128xbf16, #tpu.memory_space<vmem>>, vector<1x32x128xbf16>
    %22 = vector.shape_cast %21 : vector<1x32x128xbf16> to vector<32x128xbf16>
    %23 = vector.shape_cast %20 : vector<32x128xbf16> to vector<1x32x128xbf16>
    tpu.vector_store %arg4[%c0_17, %c0_18, %c0_19], %23 {strides = array<i32>} : memref<1x32x128xbf16, #tpu.memory_space<vmem>>, vector<1x32x128xbf16>,
    %cst_20 = arith.constant dense<0.000000e+00> : vector<128xf32>
    %24 = vector.multi_reduction <add>, %19, %cst_20 [0] : vector<32x128xf32> to vector<128xf32>
    %25 = vector.shape_cast %24 : vector<128xf32> to vector<1x128xf32>
    %26 = arith.mulf %19, %19 : vector<32x128xf32>
    %cst_21 = arith.constant dense<0.000000e+00> : vector<128xf32>
    %27 = vector.multi_reduction <add>, %26, %cst_21 [0] : vector<32x128xf32> to vector<128xf32>
    %28 = vector.shape_cast %27 : vector<128xf32> to vector<1x128xf32>
    %29 = tpu.concatenate %25, %28 in 0 : vector<1x128xf32>, vector<1x128xf32> -> vector<2x128xf32>
    %c0_22 = arith.constant 0 : index
    %c0_23 = arith.constant 0 : index
    %c0_24 = arith.constant 0 : index
    %30 = vector.load %arg5[%c0_22, %c0_23, %c0_24] : memref<1x2x128xf32, #tpu.memory_space<vmem>>, vector<1x2x128xf32>
    %31 = vector.shape_cast %30 : vector<1x2x128xf32> to vector<2x128xf32>
    %32 = vector.shape_cast %29 : vector<2x128xf32> to vector<1x2x128xf32>
    tpu.vector_store %arg5[%c0_22, %c0_23, %c0_24], %32 {strides = array<i32>} : memref<1x2x128xf32, #tpu.memory_space<vmem>>, vector<1x2x128xf32>,
    return
  }
  func.func @transform_0(%arg0: i32) -> (i32, i32, i32) {
    %c0_i32 = arith.constant 0 : i32
    %c0_i32_0 = arith.constant 0 : i32
    %c0_i32_1 = arith.constant 0 : i32
    return %arg0, %c0_i32, %c0_i32_0 : i32, i32, i32
  }
  func.func @transform_1(%arg0: i32) -> (i32, i32, i32) {
    %c0_i32 = arith.constant 0 : i32
    %c0_i32_0 = arith.constant 0 : i32
    %c0_i32_1 = arith.constant 0 : i32
    %c0_i32_2 = arith.constant 0 : i32
    return %c0_i32, %c0_i32_0, %c0_i32_1 : i32, i32, i32
  }
  func.func @transform_2(%arg0: i32) -> (i32, i32) {
    %c0_i32 = arith.constant 0 : i32
    %c0_i32_0 = arith.constant 0 : i32
    %c0_i32_1 = arith.constant 0 : i32
    return %c0_i32, %c0_i32_0 : i32, i32
  }
  func.func @transform_3(%arg0: i32) -> (i32, i32, i32) {
    %c0_i32 = arith.constant 0 : i32
    %c0_i32_0 = arith.constant 0 : i32
    %c0_i32_1 = arith.constant 0 : i32
    return %arg0, %c0_i32, %c0_i32_0 : i32, i32, i32
  }
  func.func @transform_4(%arg0: i32) -> (i32, i32, i32) {
    %c0_i32 = arith.constant 0 : i32
    %c0_i32_0 = arith.constant 0 : i32
    %c0_i32_1 = arith.constant 0 : i32
    return %arg0, %c0_i32, %c0_i32_0 : i32, i32, i32
  }
}

module attributes {stable_mosaic.version = 11 : i64} {
  func.func @_bn_apply_kernel(%arg0: i32, %arg1: memref<64x128xbf16, #tpu.memory_space<vmem>>, %arg2: memref<1x128xf32, #tpu.memory_space<vmem>>, %arg3: memref<1x128xf32, #tpu.memory_space<vmem>>, %arg4: memref<64x128xbf16, #tpu.memory_space<vmem>>) attributes {dimension_semantics = [#tpu.dimension_semantics<parallel>], iteration_bounds = array<i64: 1>, scalar_prefetch = 0 : i64, scratch_operands = 0 : i64, tpu.core_type = #tpu.core_type<tc>, window_params = [{transform_indices = @transform_0, window_bounds = array<i64: 64, 128>}, {pipeline_mode = #tpu.pipeline_mode<synchronous>, transform_indices = @transform_1, window_bounds = array<i64: 1, 128>}, {pipeline_mode = #tpu.pipeline_mode<synchronous>, transform_indices = @transform_2, window_bounds = array<i64: 1, 128>}, {transform_indices = @transform_3, window_bounds = array<i64: 64, 128>}]} {
    %c0 = arith.constant 0 : index
    %c0_0 = arith.constant 0 : index
    %0 = vector.load %arg1[%c0, %c0_0] : memref<64x128xbf16, #tpu.memory_space<vmem>>, vector<64x128xbf16>
    %1 = arith.extf %0 : vector<64x128xbf16> to vector<64x128xf32>
    %c0_1 = arith.constant 0 : index
    %c0_2 = arith.constant 0 : index
    %2 = vector.load %arg2[%c0_1, %c0_2] : memref<1x128xf32, #tpu.memory_space<vmem>>, vector<1x128xf32>
    %3 = vector.broadcast %2 : vector<1x128xf32> to vector<64x128xf32>
    %4 = arith.mulf %1, %3 : vector<64x128xf32>
    %c0_3 = arith.constant 0 : index
    %c0_4 = arith.constant 0 : index
    %5 = vector.load %arg3[%c0_3, %c0_4] : memref<1x128xf32, #tpu.memory_space<vmem>>, vector<1x128xf32>
    %6 = vector.broadcast %5 : vector<1x128xf32> to vector<64x128xf32>
    %7 = arith.addf %4, %6 : vector<64x128xf32>
    %8 = arith.truncf %7 : vector<64x128xf32> to vector<64x128xbf16>
    %c0_5 = arith.constant 0 : index
    %c0_6 = arith.constant 0 : index
    %9 = vector.load %arg4[%c0_5, %c0_6] : memref<64x128xbf16, #tpu.memory_space<vmem>>, vector<64x128xbf16>
    tpu.vector_store %arg4[%c0_5, %c0_6], %8 {strides = array<i32>} : memref<64x128xbf16, #tpu.memory_space<vmem>>, vector<64x128xbf16>,
    return
  }
  func.func @transform_0(%arg0: i32) -> (i32, i32) {
    %c0_i32 = arith.constant 0 : i32
    %c0_i32_0 = arith.constant 0 : i32
    return %arg0, %c0_i32 : i32, i32
  }
  func.func @transform_1(%arg0: i32) -> (i32, i32) {
    %c0_i32 = arith.constant 0 : i32
    %c0_i32_0 = arith.constant 0 : i32
    %c0_i32_1 = arith.constant 0 : i32
    return %c0_i32, %c0_i32_0 : i32, i32
  }
  func.func @transform_2(%arg0: i32) -> (i32, i32) {
    %c0_i32 = arith.constant 0 : i32
    %c0_i32_0 = arith.constant 0 : i32
    %c0_i32_1 = arith.constant 0 : i32
    return %c0_i32, %c0_i32_0 : i32, i32
  }
  func.func @transform_3(%arg0: i32) -> (i32, i32) {
    %c0_i32 = arith.constant 0 : i32
    %c0_i32_0 = arith.constant 0 : i32
    return %arg0, %c0_i32 : i32, i32
  }
}

</mosaic_0001>

<llo_original>
// kernel: encoder_forward.4
$region0: #{encoder_forward.4}
  #allocation0 [shape = 'u32[]', space=smem, size = 0x4, offset = 0x4, fixed_abs, tag = 'smem constant byte address 0x4 - core index']
  #allocation1 [shape = 'u32[144,128]{1,0:T(1,128)}', space=vmem, size = 0x12000, scoped, tag = 'internal scratch']
  %s0 = inlined_call_operand.vmem [shape: bf16[2,320,96], index: 0, kind: input, shape index: {}]
  %s1 = inlined_call_operand.vmem [shape: bf16[2,96,128], index: 1, kind: input, shape index: {}]
  %s2 = inlined_call_operand.vmem [shape: f32[1,128], index: 2, kind: input, shape index: {}]
  %s3 = inlined_call_operand.vmem [shape: bf16[2,256,128], index: 3, kind: output, shape index: {}]
  %s4 = sld [smem:[#allocation0]]
  $region45: #{encoder_forward.4} parent=0
    _
  %s6 = ssub.s32 1, %s4
  %s7 = scalar_select 0, %s6, %s4
  loop: start=0, step=1, limit=4
  $region2: #{encoder_forward.4} parent=0 // loop_pre_header
    _
  $region3: #{encoder_forward.4} parent=0 // loop_header
    %s9 = sphi 0, %s13
    %p10 = scmp.ge.s32.totalorder %s9, 4
    %s19 = sphi 0, %s21
    %s22 = sphi 0, %s19
    %s23 = sphi 0, %s22
    %s39 = sphi 0, %s23
    %s43 = sphi 0, %s43
    %s45 = sphi 0, %s43
    %s46 = sphi 0, %s45
    %s60 = sphi 0, %s46
    %s64 = sphi 0, %s64
    %s66 = sphi 0, %s64
    %s67 = sphi 0, %s66
    %s81 = sphi 0, %s67
    %s87 = sphi 0, %s89
    %s90 = sphi 0, %s87
    %s91 = sphi 0, %s90
    %s107 = sphi 0, %s91
  $region4: #{encoder_forward.4} parent=0 // loop_header_branch
    %12 = sbr.rel (%p10) target = $region8
  $region5: #{encoder_forward.4} parent=0 // loop_body
    %s14 = ssub.s32 %s9, 1
    %s15 = ssub.s32 %s9, 2
    %s16 = sadd.s32 %s9, 1
    %s17 = ssub.s32 %s9, %s16
    %p18 = scmp.eq.s32.totalorder %s17, 0
    %s20 = sadd.s32 %s19, 1
    %s21 = scalar_select %p18, %s19, %s20
    %p24 = pneg %p18
    %p25 = scmp.eq.s32.totalorder %s9, 1
    %p26 = por %p24, %p25
    %p27 = scmp.ne.s32.totalorder %s19, %s22
    %p28 = scmp.eq.s32.totalorder %s9, 0
    %p29 = por %p27, %p28
    %p30 = scmp.ne.s32.totalorder %s19, %s22
    %p31 = scmp.eq.s32.totalorder %s14, 1
    %p32 = por %p30, %p31
    %p33 = scmp.ne.s32.totalorder %s22, %s23
    %p34 = scmp.eq.s32.totalorder %s14, 0
    %p35 = por %p33, %p34
    %p36 = scmp.ne.s32.totalorder %s22, %s23
    %p37 = scmp.eq.s32.totalorder %s15, 1
    %p38 = por %p36, %p37
    %p40 = scmp.ne.s32.totalorder %s23, %s39
    %p41 = scmp.eq.s32.totalorder %s15, 0
    %p42 = por %p40, %p41
    %s44 = sadd.s32 %s43, 1
    %p47 = scmp.eq.s32.totalorder %s9, 1
    %p48 = scmp.ne.s32.totalorder %s43, %s45
    %p49 = scmp.eq.s32.totalorder %s9, 0
    %p50 = por %p48, %p49
    %p51 = scmp.ne.s32.totalorder %s43, %s45
    %p52 = scmp.eq.s32.totalorder %s14, 1
    %p53 = por %p51, %p52
    %p54 = scmp.ne.s32.totalorder %s45, %s46
    %p55 = scmp.eq.s32.totalorder %s14, 0
    %p56 = por %p54, %p55
    %p57 = scmp.ne.s32.totalorder %s45, %s46
    %p58 = scmp.eq.s32.totalorder %s15, 1
    %p59 = por %p57, %p58
    %p61 = scmp.ne.s32.totalorder %s46, %s60
    %p62 = scmp.eq.s32.totalorder %s15, 0
    %p63 = por %p61, %p62
    %s65 = sadd.s32 %s64, 1
    %p68 = scmp.eq.s32.totalorder %s9, 1
    %p69 = scmp.ne.s32.totalorder %s64, %s66
    %p70 = scmp.eq.s32.totalorder %s9, 0
    %p71 = por %p69, %p70
    %p72 = scmp.ne.s32.totalorder %s64, %s66
    %p73 = scmp.eq.s32.totalorder %s14, 1
    %p74 = por %p72, %p73
    %p75 = scmp.ne.s32.totalorder %s66, %s67
    %p76 = scmp.eq.s32.totalorder %s14, 0
    %p77 = por %p75, %p76
    %p78 = scmp.ne.s32.totalorder %s66, %s67
    %p79 = scmp.eq.s32.totalorder %s15, 1
    %p80 = por %p78, %p79
    %p82 = scmp.ne.s32.totalorder %s67, %s81
    %p83 = scmp.eq.s32.totalorder %s15, 0
    %p84 = por %p82, %p83
    %s85 = ssub.s32 %s9, %s16
    %p86 = scmp.eq.s32.totalorder %s85, 0
    %s88 = sadd.s32 %s87, 1
    %s89 = scalar_select %p86, %s87, %s88
    %p92 = pneg %p86
    %p93 = scmp.eq.s32.totalorder %s9, 1
    %p94 = por %p92, %p93
    %p95 = scmp.ne.s32.totalorder %s87, %s90
    %p96 = scmp.eq.s32.totalorder %s9, 0
    %p97 = por %p95, %p96
    %p98 = scmp.ne.s32.totalorder %s87, %s90
    %p99 = scmp.eq.s32.totalorder %s14, 1
    %p100 = por %p98, %p99
    %p101 = scmp.ne.s32.totalorder %s90, %s91
    %p102 = scmp.eq.s32.totalorder %s14, 0
    %p103 = por %p101, %p102
    %p104 = scmp.ne.s32.totalorder %s90, %s91
    %p105 = scmp.eq.s32.totalorder %s15, 1
    %p106 = por %p104, %p105
    %p108 = scmp.ne.s32.totalorder %s91, %s107
    %p109 = scmp.eq.s32.totalorder %s15, 0
    %p110 = por %p108, %p109
    %p111 = scmp.le.s32.totalorder 1, %s9
    %p112 = scmp.lt.s32.totalorder %s9, 3
    %p113 = pnand %p111, %p112
    %p114 = pneg %p113
    // Predicated region
    $region9: #{encoder_forward.4} parent=5 // pred_check
      _
    $region10: #{encoder_forward.4} parent=5 // pred_check_branch
      %116 = sbr.rel (%p113) target = $region12
    $region11: #{encoder_forward.4} parent=5 // pred_region
      %s117 = ssub.s32 %s9, 1
      // Predicated region
      $region13: #{encoder_forward.4} parent=11 // pred_check
        %p118 = pneg %p56
      $region14: #{encoder_forward.4} parent=11 // pred_check_branch
        %120 = sbr.rel (%p118) target = $region16
      $region15: #{encoder_forward.4} parent=11 // pred_region
        _
      $region16: #{encoder_forward.4} parent=11 // pred_fallthru
        _
      // Predicated region
      $region17: #{encoder_forward.4} parent=11 // pred_check
        %p121 = pneg %p77
      $region18: #{encoder_forward.4} parent=11 // pred_check_branch
        %123 = sbr.rel (%p121) target = $region20
      $region19: #{encoder_forward.4} parent=11 // pred_region
        _
      $region20: #{encoder_forward.4} parent=11 // pred_fallthru
        _
    $region12: #{encoder_forward.4} parent=5 // pred_fallthru
      _
    %p124 = scmp.lt.s32.totalorder %s9, 2
    // Predicated region
    $region21: #{encoder_forward.4} parent=5 // pred_check
      %p125 = pneg %p124
    $region22: #{encoder_forward.4} parent=5 // pred_check_branch
      %127 = sbr.rel (%p125) target = $region24
    $region23: #{encoder_forward.4} parent=5 // pred_region
      // Predicated region
      $region25: #{encoder_forward.4} parent=23 // pred_check
        %p128 = pneg %p29
      $region26: #{encoder_forward.4} parent=23 // pred_check_branch
        %130 = sbr.rel (%p128) target = $region28
      $region27: #{encoder_forward.4} parent=23 // pred_region
        %p131 = scmp.lt.s32.totalorder %s9, 1
        %s132 = scalar_select %p131, %s9, 1
        %s133 = smul.addr %s132, 40
        %s134 = smul.addr %s133, 4
        %s135 = scalar_lea.vmem %s0, %s134
      $region28: #{encoder_forward.4} parent=23 // pred_fallthru
        _
    $region24: #{encoder_forward.4} parent=5 // pred_fallthru
      _
    %p136 = scmp.le.s32.totalorder 1, %s9
    %p137 = scmp.lt.s32.totalorder %s9, 3
    %p138 = pnand %p136, %p137
    %p139 = pneg %p138
    // Predicated region
    $region29: #{encoder_forward.4} parent=5 // pred_check
      _
    $region30: #{encoder_forward.4} parent=5 // pred_check_branch
      %141 = sbr.rel (%p138) target = $region32
    $region31: #{encoder_forward.4} parent=5 // pred_region
      %s142 = ssub.s32 %s9, 1
      %p143 = scmp.lt.s32.totalorder %s14, 1
      %s144 = scalar_select %p143, %s14, 1
      %s145 = smul.addr %s144, 40
      %s146 = smul.addr %s145, 4
      %s147 = scalar_lea.vmem %s0, %s146
      %p148 = pneg %p35
      %p149 = pneg %p32
      %p150 = pneg %p56
      %p151 = pneg %p53
      %p152 = pneg %p77
      %p153 = pneg %p74
      %p154 = pneg %p103
      %p155 = pneg %p100
      %p156 = scmp.lt.s32.totalorder %s14, 1
      %s157 = scalar_select %p156, %s14, 1
      %s158 = smul.addr %s157, 32
      %s159 = smul.addr %s158, 4
      %s160 = scalar_lea.vmem %s3, %s159
      %p161 = scmp.lt.s32.totalorder %s14, 1
      %s162 = scalar_select %p161, %s14, 1
      %s163 = smul.addr %s162, 40
      %s164 = smul.addr %s163, 4
      %s165 = scalar_lea.vmem %s0, %s164
      %p166 = scmp.lt.s32.totalorder %s14, 1
      %s167 = scalar_select %p166, %s14, 1
      %s168 = smul.addr %s167, 32
      %s169 = smul.addr %s168, 4
      %s170 = scalar_lea.vmem %s3, %s169
      %v172 = vld [vmem:[%s165] sm:$0xf]
      %v173 = vld [vmem:[%s165 + $0x4] sm:$0xf]
      %v174 = vld [vmem:[%s165 + $0x8] sm:$0xf]
      %v175 = vld [vmem:[%s165 + $0xc] sm:$0xf]
      %v176 = vld [vmem:[%s165 + $0x10] sm:$0xf]
      %v177 = vld [vmem:[%s165 + $0x14] sm:$0xf]
      %v178 = vld [vmem:[%s165 + $0x18] sm:$0xf]
      %v179 = vld [vmem:[%s165 + $0x1c] sm:$0xf]
      %v180 = vld [vmem:[%s165 + $0x20] sm:$0xf]
      %v181 = vld [vmem:[%s165 + $0x24] sm:$0xf]
      %v182 = vld [vmem:[%s165 + $0x28] sm:$0xf]
      %v183 = vld [vmem:[%s165 + $0x2c] sm:$0xf]
      %v184 = vld [vmem:[%s165 + $0x30] sm:$0xf]
      %v185 = vld [vmem:[%s165 + $0x34] sm:$0xf]
      %v186 = vld [vmem:[%s165 + $0x38] sm:$0xf]
      %v187 = vld [vmem:[%s165 + $0x3c] sm:$0xf]
      %v188 = vld [vmem:[%s165 + $0x40] sm:$0xf]
      %v189 = vld [vmem:[%s165 + $0x44] sm:$0xf]
      %v190 = vld [vmem:[%s165 + $0x48] sm:$0xf]
      %v191 = vld [vmem:[%s165 + $0x4c] sm:$0xf]
      %v192 = vld [vmem:[%s165 + $0x50] sm:$0xf]
      %v193 = vld [vmem:[%s165 + $0x54] sm:$0xf]
      %v194 = vld [vmem:[%s165 + $0x58] sm:$0xf]
      %v195 = vld [vmem:[%s165 + $0x5c] sm:$0xf]
      %v196 = vld [vmem:[%s165 + $0x60] sm:$0xf]
      %v197 = vld [vmem:[%s165 + $0x64] sm:$0xf]
      %v198 = vld [vmem:[%s165 + $0x68] sm:$0xf]
      %v199 = vld [vmem:[%s165 + $0x6c] sm:$0xf]
      %v200 = vld [vmem:[%s165 + $0x70] sm:$0xf]
      %v201 = vld [vmem:[%s165 + $0x74] sm:$0xf]
      %v202 = vld [vmem:[%s165 + $0x78] sm:$0xf]
      %v203 = vld [vmem:[%s165 + $0x7c] sm:$0xf]
      %v204 = vld [vmem:[%s1] sm:$0xf]
      %v205 = vld [vmem:[%s1 + $0x4] sm:$0xf]
      %v206 = vld [vmem:[%s1 + $0x8] sm:$0xf]
      %v207 = vld [vmem:[%s1 + $0xc] sm:$0xf]
      %v208 = vld [vmem:[%s1 + $0x10] sm:$0xf]
      %v209 = vld [vmem:[%s1 + $0x14] sm:$0xf]
      %v210 = vld [vmem:[%s1 + $0x18] sm:$0xf]
      %v211 = vld [vmem:[%s1 + $0x1c] sm:$0xf]
      %v212 = vld [vmem:[%s1 + $0x20] sm:$0xf]
      %v213 = vld [vmem:[%s1 + $0x24] sm:$0xf]
      %v214 = vld [vmem:[%s1 + $0x28] sm:$0xf]
      %v215 = vld [vmem:[%s1 + $0x2c] sm:$0xf]
      %v216 = vld [vmem:[%s165 + $0x80] sm:$0xf]
      %v217 = vld [vmem:[%s165 + $0x84] sm:$0xf]
      %v218 = vld [vmem:[%s165 + $0x88] sm:$0xf]
      %v219 = vld [vmem:[%s165 + $0x8c] sm:$0xf]
      %v220 = vld [vmem:[%s165 + $0x90] sm:$0xf]
      %v221 = vld [vmem:[%s165 + $0x94] sm:$0xf]
      %v222 = vld [vmem:[%s165 + $0x98] sm:$0xf]
      %v223 = vld [vmem:[%s165 + $0x9c] sm:$0xf]
      %s224 = scalar_lea.vmem %s1, 48
      %v225 = vld [vmem:[%s224] sm:$0xf]
      %v226 = vld [vmem:[%s224 + $0x4] sm:$0xf]
      %v227 = vld [vmem:[%s224 + $0x8] sm:$0xf]
      %v228 = vld [vmem:[%s224 + $0xc] sm:$0xf]
      %v229 = vld [vmem:[%s224 + $0x10] sm:$0xf]
      %v230 = vld [vmem:[%s224 + $0x14] sm:$0xf]
      %v231 = vld [vmem:[%s224 + $0x18] sm:$0xf]
      %v232 = vld [vmem:[%s224 + $0x1c] sm:$0xf]
      %v233 = vld [vmem:[%s224 + $0x20] sm:$0xf]
      %v234 = vld [vmem:[%s224 + $0x24] sm:$0xf]
      %v235 = vld [vmem:[%s224 + $0x28] sm:$0xf]
      %v236 = vld [vmem:[%s224 + $0x2c] sm:$0xf]
      %v269 = vunpack.c.l.b16 %v180
      %v270 = vunpack.c.l.b16 %v181
      %v271 = vunpack.c.l.b16 %v182
      %v272 = vunpack.c.l.b16 %v183
      %v273 = vunpack.c.l.b16 %v184
      %v274 = vunpack.c.l.b16 %v185
      %v275 = vunpack.c.l.b16 %v186
      %v276 = vunpack.c.l.b16 %v187
      %v277 = vunpack.c.l.b16 %v188
      %v278 = vunpack.c.l.b16 %v189
      %v279 = vunpack.c.l.b16 %v190
      %v280 = vunpack.c.l.b16 %v191
      %v281 = vunpack.c.l.b16 %v192
      %v282 = vunpack.c.l.b16 %v193
      %v283 = vunpack.c.l.b16 %v194
      %v284 = vunpack.c.l.b16 %v195
      %v285 = vunpack.c.l.b16 %v196
      %v286 = vunpack.c.l.b16 %v197
      %v287 = vunpack.c.l.b16 %v198
      %v288 = vunpack.c.l.b16 %v199
      %v289 = vunpack.c.l.b16 %v200
      %v290 = vunpack.c.l.b16 %v201
      %v291 = vunpack.c.l.b16 %v202
      %v292 = vunpack.c.l.b16 %v203
      %v293 = vunpack.c.l.b16 %v216
      %v294 = vunpack.c.l.b16 %v217
      %v295 = vunpack.c.l.b16 %v218
      %v296 = vunpack.c.l.b16 %v219
      %v297 = vunpack.c.l.b16 %v220
      %v298 = vunpack.c.l.b16 %v221
      %v299 = vunpack.c.l.b16 %v222
      %v300 = vunpack.c.l.b16 %v223
      %v301 = vpack.c.b16 %v270, %v269
      %v302 = vpack.c.b16 %v272, %v271
      %v303 = vpack.c.b16 %v274, %v273
      %v304 = vpack.c.b16 %v276, %v275
      %v305 = vpack.c.b16 %v278, %v277
      %v306 = vpack.c.b16 %v280, %v279
      %v307 = vpack.c.b16 %v282, %v281
      %v308 = vpack.c.b16 %v284, %v283
      %v309 = vpack.c.b16 %v286, %v285
      %v310 = vpack.c.b16 %v288, %v287
      %v311 = vpack.c.b16 %v290, %v289
      %v312 = vpack.c.b16 %v292, %v291
      %v313 = vpack.c.b16 %v294, %v293
      %v314 = vpack.c.b16 %v296, %v295
      %v315 = vpack.c.b16 %v298, %v297
      %v316 = vpack.c.b16 %v300, %v299
      %v329 = vunpack.c.l.b16 %v225
      %v330 = vunpack.c.l.b16 %v226
      %v331 = vunpack.c.l.b16 %v227
      %v332 = vunpack.c.l.b16 %v228
      %v333 = vunpack.c.l.b16 %v229
      %v334 = vunpack.c.l.b16 %v230
      %v335 = vunpack.c.l.b16 %v231
      %v336 = vunpack.c.l.b16 %v232
      %v337 = vunpack.c.l.b16 %v233
      %v338 = vunpack.c.l.b16 %v234
      %v339 = vunpack.c.l.b16 %v235
      %v340 = vunpack.c.l.b16 %v236
      %v341 = vpack.c.b16 %v330, %v329
      %v342 = vpack.c.b16 %v332, %v331
      %v343 = vpack.c.b16 %v334, %v333
      %v344 = vpack.c.b16 %v336, %v335
      %v345 = vpack.c.b16 %v338, %v337
      %v346 = vpack.c.b16 %v340, %v339
      %vm353 = vcmask 785408
      %v355 = vsel %vm353, %v301, 0
      %v358 = vsel %vm353, %v302, 0
      %v361 = vsel %vm353, %v303, 0
      %v364 = vsel %vm353, %v304, 0
      %v367 = vsel %vm353, %v305, 0
      %v370 = vsel %vm353, %v306, 0
      %v373 = vsel %vm353, %v307, 0
      %v376 = vsel %vm353, %v308, 0
      %v379 = vsel %vm353, %v309, 0
      %v382 = vsel %vm353, %v310, 0
      %v385 = vsel %vm353, %v311, 0
      %v388 = vsel %vm353, %v312, 0
      %v391 = vsel %vm353, %v313, 0
      %v394 = vsel %vm353, %v314, 0
      %v397 = vsel %vm353, %v315, 0
      %v400 = vsel %vm353, %v316, 0
      %402 = vmatprep.subr.bf16.mxu0 0
      %403 = vmatpush1.bf16.msra.mxu0 %v341
      %404 = vmatprep.subr.bf16.mxu0 0
      %405 = vmatpush1.bf16.msra.mxu0 %v342
      %406 = vmatprep.subr.bf16.mxu0 0
      %407 = vmatpush1.bf16.msra.mxu0 %v343
      %408 = vmatprep.subr.bf16.mxu0 0
      %409 = vmatpush1.bf16.msra.mxu0 %v344
      %410 = vmatprep.subr.bf16.mxu0 0
      %411 = vmatpush1.bf16.msra.mxu0 %v345
      %412 = vmatprep.subr.bf16.mxu0 0
      %413 = vmatpush1.bf16.msra.mxu0 %v346
      %414 = vmatprep.subr.bf16.mxu0 0
      %415 = vmatpush1.bf16.msra.mxu0 0
      %416 = vmatprep.subr.bf16.mxu0 0
      %417 = vmatpush1.bf16.msra.mxu0 0
      %418 = vmatprep.subr.bf16.mxu0 0
      %419 = vmatpush1.bf16.msra.mxu0 0
      %420 = vmatprep.subr.bf16.mxu0 0
      %421 = vmatpush1.bf16.msra.mxu0 0
      %422 = vmatprep.subr.bf16.mxu0 0
      %423 = vmatpush1.bf16.msra.mxu0 0
      %424 = vmatprep.subr.bf16.mxu0 0
      %425 = vmatpush1.bf16.msra.mxu0 0
      %426 = vmatprep.subr.bf16.mxu0 0
      %427 = vmatpush1.bf16.msra.mxu0 0
      %428 = vmatprep.subr.bf16.mxu0 0
      %429 = vmatpush1.bf16.msra.mxu0 0
      %430 = vmatprep.subr.bf16.mxu0 0
      %431 = vmatpush1.bf16.msra.mxu0 0
      %432 = vmatprep.subr.bf16.mxu0 0
      %433 = vmatpush1.bf16.msra.mxu0 0
      %434 = vmatprep.mubr.bf16.mxu0 0
      %435 = vmatmul.mubr.bf16.gmra.mrb[0].mxu0 %v355
      %v436 = vpop.f32.mrb[0].mxu0
      %v437 = vadd.f32 0.0, %v436
      %v438 = vpop.f32.mrb[0].mxu0
      %v439 = vpop.f32.mrb[0].mxu0
      %v440 = vadd.f32 0.0, %v439
      %v441 = vpop.f32.mrb[0].mxu0
      %442 = vmatprep.mubr.bf16.mxu0 0
      %443 = vmatmul.mubr.bf16.gmra.mrb[0].mxu0 %v358
      %v444 = vpop.f32.mrb[0].mxu0
      %v445 = vadd.f32 0.0, %v444
      %v446 = vpop.f32.mrb[0].mxu0
      %v447 = vpop.f32.mrb[0].mxu0
      %v448 = vadd.f32 0.0, %v447
      %v449 = vpop.f32.mrb[0].mxu0
      %450 = vmatprep.mubr.bf16.mxu0 0
      %451 = vmatmul.mubr.bf16.gmra.mrb[0].mxu0 %v361
      %v452 = vpop.f32.mrb[0].mxu0
      %v453 = vadd.f32 0.0, %v452
      %v454 = vpop.f32.mrb[0].mxu0
      %v455 = vpop.f32.mrb[0].mxu0
      %v456 = vadd.f32 0.0, %v455
      %v457 = vpop.f32.mrb[0].mxu0
      %458 = vmatprep.mubr.bf16.mxu0 0
      %459 = vmatmul.mubr.bf16.gmra.mrb[0].mxu0 %v364
      %v460 = vpop.f32.mrb[0].mxu0
      %v461 = vadd.f32 0.0, %v460
      %v462 = vpop.f32.mrb[0].mxu0
      %v463 = vpop.f32.mrb[0].mxu0
      %v464 = vadd.f32 0.0, %v463
      %v465 = vpop.f32.mrb[0].mxu0
      %466 = vmatprep.mubr.bf16.mxu0 0
      %467 = vmatmul.mubr.bf16.gmra.mrb[0].mxu0 %v367
      %v468 = vpop.f32.mrb[0].mxu0
      %v469 = vadd.f32 0.0, %v468
      %v470 = vpop.f32.mrb[0].mxu0
      %v471 = vpop.f32.mrb[0].mxu0
      %v472 = vadd.f32 0.0, %v471
      %v473 = vpop.f32.mrb[0].mxu0
      %474 = vmatprep.mubr.bf16.mxu0 0
      %475 = vmatmul.mubr.bf16.gmra.mrb[0].mxu0 %v370
      %v476 = vpop.f32.mrb[0].mxu0
      %v477 = vadd.f32 0.0, %v476
      %v478 = vpop.f32.mrb[0].mxu0
      %v479 = vpop.f32.mrb[0].mxu0
      %v480 = vadd.f32 0.0, %v479
      %v481 = vpop.f32.mrb[0].mxu0
      %482 = vmatprep.mubr.bf16.mxu0 0
      %483 = vmatmul.mubr.bf16.gmra.mrb[0].mxu0 %v373
      %v484 = vpop.f32.mrb[0].mxu0
      %v485 = vadd.f32 0.0, %v484
      %v486 = vpop.f32.mrb[0].mxu0
      %v487 = vpop.f32.mrb[0].mxu0
      %v488 = vadd.f32 0.0, %v487
      %v489 = vpop.f32.mrb[0].mxu0
      %490 = vmatprep.mubr.bf16.mxu0 0
      %491 = vmatmul.mubr.bf16.gmra.mrb[0].mxu0 %v376
      %v492 = vpop.f32.mrb[0].mxu0
      %v493 = vadd.f32 0.0, %v492
      %v494 = vpop.f32.mrb[0].mxu0
      %v495 = vpop.f32.mrb[0].mxu0
      %v496 = vadd.f32 0.0, %v495
      %v497 = vpop.f32.mrb[0].mxu0
      %498 = vmatprep.mubr.bf16.mxu0 0
      %499 = vmatmul.mubr.bf16.gmra.mrb[0].mxu0 %v379
      %v500 = vpop.f32.mrb[0].mxu0
      %v501 = vadd.f32 0.0, %v500
      %v502 = vpop.f32.mrb[0].mxu0
      %v503 = vpop.f32.mrb[0].mxu0
      %v504 = vadd.f32 0.0, %v503
      %v505 = vpop.f32.mrb[0].mxu0
      %506 = vmatprep.mubr.bf16.mxu0 0
      %507 = vmatmul.mubr.bf16.gmra.mrb[0].mxu0 %v382
      %v508 = vpop.f32.mrb[0].mxu0
      %v509 = vadd.f32 0.0, %v508
      %v510 = vpop.f32.mrb[0].mxu0
      %v511 = vpop.f32.mrb[0].mxu0
      %v512 = vadd.f32 0.0, %v511
      %v513 = vpop.f32.mrb[0].mxu0
      %514 = vmatprep.mubr.bf16.mxu0 0
      %515 = vmatmul.mubr.bf16.gmra.mrb[0].mxu0 %v385
      %v516 = vpop.f32.mrb[0].mxu0
      %v517 = vadd.f32 0.0, %v516
      %v518 = vpop.f32.mrb[0].mxu0
      %v519 = vpop.f32.mrb[0].mxu0
      %v520 = vadd.f32 0.0, %v519
      %v521 = vpop.f32.mrb[0].mxu0
      %522 = vmatprep.mubr.bf16.mxu0 0
      %523 = vmatmul.mubr.bf16.gmra.mrb[0].mxu0 %v388
      %v524 = vpop.f32.mrb[0].mxu0
      %v525 = vadd.f32 0.0, %v524
      %v526 = vpop.f32.mrb[0].mxu0
      %v527 = vpop.f32.mrb[0].mxu0
      %v528 = vadd.f32 0.0, %v527
      %v529 = vpop.f32.mrb[0].mxu0
      %530 = vmatprep.mubr.bf16.mxu0 0
      %531 = vmatmul.mubr.bf16.gmra.mrb[0].mxu0 %v391
      %v532 = vpop.f32.mrb[0].mxu0
      %v533 = vadd.f32 0.0, %v532
      %v534 = vpop.f32.mrb[0].mxu0
      %v535 = vpop.f32.mrb[0].mxu0
      %v536 = vadd.f32 0.0, %v535
      %v537 = vpop.f32.mrb[0].mxu0
      %538 = vmatprep.mubr.bf16.mxu0 0
      %539 = vmatmul.mubr.bf16.gmra.mrb[0].mxu0 %v394
      %v540 = vpop.f32.mrb[0].mxu0
      %v541 = vadd.f32 0.0, %v540
      %v542 = vpop.f32.mrb[0].mxu0
      %v543 = vpop.f32.mrb[0].mxu0
      %v544 = vadd.f32 0.0, %v543
      %v545 = vpop.f32.mrb[0].mxu0
      %546 = vmatprep.mubr.bf16.mxu0 0
      %547 = vmatmul.mubr.bf16.gmra.mrb[0].mxu0 %v397
      %v548 = vpop.f32.mrb[0].mxu0
      %v549 = vadd.f32 0.0, %v548
      %v550 = vpop.f32.mrb[0].mxu0
      %v551 = vpop.f32.mrb[0].mxu0
      %v552 = vadd.f32 0.0, %v551
      %v553 = vpop.f32.mrb[0].mxu0
      %554 = vmatprep.mubr.bf16.mxu0 0
      %555 = vmatmul.mubr.bf16.gmra.mrb[0].mxu0 %v400
      %v556 = vpop.f32.mrb[0].mxu0
      %v557 = vadd.f32 0.0, %v556
      %v558 = vpop.f32.mrb[0].mxu0
      %v559 = vpop.f32.mrb[0].mxu0
      %v560 = vadd.f32 0.0, %v559
      %v561 = vpop.f32.mrb[0].mxu0
      %562 = vdwg.mxu0
      %v571 = vunpack.c.l.b16 %v172
      %v572 = vunpack.c.l.b16 %v173
      %v573 = vunpack.c.l.b16 %v174
      %v574 = vunpack.c.l.b16 %v175
      %v575 = vunpack.c.l.b16 %v176
      %v576 = vunpack.c.l.b16 %v177
      %v577 = vunpack.c.l.b16 %v178
      %v578 = vunpack.c.l.b16 %v179
      %v579 = vpack.c.b16 %v572, %v571
      %v580 = vpack.c.b16 %v574, %v573
      %v581 = vpack.c.b16 %v576, %v575
      %v582 = vpack.c.b16 %v578, %v577
      %v595 = vunpack.c.l.b16 %v204
      %v596 = vunpack.c.l.b16 %v205
      %v597 = vunpack.c.l.b16 %v206
      %v598 = vunpack.c.l.b16 %v207
      %v599 = vunpack.c.l.b16 %v208
      %v600 = vunpack.c.l.b16 %v209
      %v601 = vunpack.c.l.b16 %v210
      %v602 = vunpack.c.l.b16 %v211
      %v603 = vunpack.c.l.b16 %v212
      %v604 = vunpack.c.l.b16 %v213
      %v605 = vunpack.c.l.b16 %v214
      %v606 = vunpack.c.l.b16 %v215
      %v607 = vpack.c.b16 %v596, %v595
      %v608 = vpack.c.b16 %v598, %v597
      %v609 = vpack.c.b16 %v600, %v599
      %v610 = vpack.c.b16 %v602, %v601
      %v611 = vpack.c.b16 %v604, %v603
      %v612 = vpack.c.b16 %v606, %v605
      %v620 = vsel %vm353, %v579, 0
      %v623 = vsel %vm353, %v580, 0
      %v626 = vsel %vm353, %v581, 0
      %v629 = vsel %vm353, %v582, 0
      %631 = vmatprep.subr.bf16.mxu0 0
      %632 = vmatpush1.bf16.msra.mxu0 %v607
      %633 = vmatprep.subr.bf16.mxu0 0
      %634 = vmatpush1.bf16.msra.mxu0 %v608
      %635 = vmatprep.subr.bf16.mxu0 0
      %636 = vmatpush1.bf16.msra.mxu0 %v609
      %637 = vmatprep.subr.bf16.mxu0 0
      %638 = vmatpush1.bf16.msra.mxu0 %v610
      %639 = vmatprep.subr.bf16.mxu0 0
      %640 = vmatpush1.bf16.msra.mxu0 %v611
      %641 = vmatprep.subr.bf16.mxu0 0
      %642 = vmatpush1.bf16.msra.mxu0 %v612
      %643 = vmatprep.subr.bf16.mxu0 0
      %644 = vmatpush1.bf16.msra.mxu0 0
      %645 = vmatprep.subr.bf16.mxu0 0
      %646 = vmatpush1.bf16.msra.mxu0 0
      %647 = vmatprep.subr.bf16.mxu0 0
      %648 = vmatpush1.bf16.msra.mxu0 0
      %649 = vmatprep.subr.bf16.mxu0 0
      %650 = vmatpush1.bf16.msra.mxu0 0
      %651 = vmatprep.subr.bf16.mxu0 0
      %652 = vmatpush1.bf16.msra.mxu0 0
      %653 = vmatprep.subr.bf16.mxu0 0
      %654 = vmatpush1.bf16.msra.mxu0 0
      %655 = vmatprep.subr.bf16.mxu0 0
      %656 = vmatpush1.bf16.msra.mxu0 0
      %657 = vmatprep.subr.bf16.mxu0 0
      %658 = vmatpush1.bf16.msra.mxu0 0
      %659 = vmatprep.subr.bf16.mxu0 0
      %660 = vmatpush1.bf16.msra.mxu0 0
      %661 = vmatprep.subr.bf16.mxu0 0
      %662 = vmatpush1.bf16.msra.mxu0 0
      %663 = vmatprep.mubr.bf16.mxu0 0
      %664 = vmatmul.mubr.bf16.gmra.mrb[0].mxu0 %v620
      %v665 = vpop.f32.mrb[0].mxu0
      %v666 = vadd.f32 %v437, %v665
      %v667 = vpop.f32.mrb[0].mxu0
      %v668 = vpop.f32.mrb[0].mxu0
      %v669 = vadd.f32 %v440, %v668
      %v670 = vpop.f32.mrb[0].mxu0
      %671 = vmatprep.mubr.bf16.mxu0 0
      %672 = vmatmul.mubr.bf16.gmra.mrb[0].mxu0 %v623
      %v673 = vpop.f32.mrb[0].mxu0
      %v674 = vadd.f32 %v445, %v673
      %v675 = vpop.f32.mrb[0].mxu0
      %v676 = vpop.f32.mrb[0].mxu0
      %v677 = vadd.f32 %v448, %v676
      %v678 = vpop.f32.mrb[0].mxu0
      %679 = vmatprep.mubr.bf16.mxu0 0
      %680 = vmatmul.mubr.bf16.gmra.mrb[0].mxu0 %v626
      %v681 = vpop.f32.mrb[0].mxu0
      %v682 = vadd.f32 %v453, %v681
      %v683 = vpop.f32.mrb[0].mxu0
      %v684 = vpop.f32.mrb[0].mxu0
      %v685 = vadd.f32 %v456, %v684
      %v686 = vpop.f32.mrb[0].mxu0
      %687 = vmatprep.mubr.bf16.mxu0 0
      %688 = vmatmul.mubr.bf16.gmra.mrb[0].mxu0 %v629
      %v689 = vpop.f32.mrb[0].mxu0
      %v690 = vadd.f32 %v461, %v689
      %v691 = vpop.f32.mrb[0].mxu0
      %v692 = vpop.f32.mrb[0].mxu0
      %v693 = vadd.f32 %v464, %v692
      %v694 = vpop.f32.mrb[0].mxu0
      %695 = vmatprep.mubr.bf16.mxu0 0
      %696 = vmatmul.mubr.bf16.gmra.mrb[0].mxu0 %v355
      %v697 = vpop.f32.mrb[0].mxu0
      %v698 = vadd.f32 %v469, %v697
      %v699 = vpop.f32.mrb[0].mxu0
      %v700 = vpop.f32.mrb[0].mxu0
      %v701 = vadd.f32 %v472, %v700
      %v702 = vpop.f32.mrb[0].mxu0
      %703 = vmatprep.mubr.bf16.mxu0 0
      %704 = vmatmul.mubr.bf16.gmra.mrb[0].mxu0 %v358
      %v705 = vpop.f32.mrb[0].mxu0
      %v706 = vadd.f32 %v477, %v705
      %v707 = vpop.f32.mrb[0].mxu0
      %v708 = vpop.f32.mrb[0].mxu0
      %v709 = vadd.f32 %v480, %v708
      %v710 = vpop.f32.mrb[0].mxu0
      %711 = vmatprep.mubr.bf16.mxu0 0
      %712 = vmatmul.mubr.bf16.gmra.mrb[0].mxu0 %v361
      %v713 = vpop.f32.mrb[0].mxu0
      %v714 = vadd.f32 %v485, %v713
      %v715 = vpop.f32.mrb[0].mxu0
      %v716 = vpop.f32.mrb[0].mxu0
      %v717 = vadd.f32 %v488, %v716
      %v718 = vpop.f32.mrb[0].mxu0
      %719 = vmatprep.mubr.bf16.mxu0 0
      %720 = vmatmul.mubr.bf16.gmra.mrb[0].mxu0 %v364
      %v721 = vpop.f32.mrb[0].mxu0
      %v722 = vadd.f32 %v493, %v721
      %v723 = vpop.f32.mrb[0].mxu0
      %v724 = vpop.f32.mrb[0].mxu0
      %v725 = vadd.f32 %v496, %v724
      %v726 = vpop.f32.mrb[0].mxu0
      %727 = vmatprep.mubr.bf16.mxu0 0
      %728 = vmatmul.mubr.bf16.gmra.mrb[0].mxu0 %v367
      %v729 = vpop.f32.mrb[0].mxu0
      %v730 = vadd.f32 %v501, %v729
      %v731 = vpop.f32.mrb[0].mxu0
      %v732 = vpop.f32.mrb[0].mxu0
      %v733 = vadd.f32 %v504, %v732
      %v734 = vpop.f32.mrb[0].mxu0
      %735 = vmatprep.mubr.bf16.mxu0 0
      %736 = vmatmul.mubr.bf16.gmra.mrb[0].mxu0 %v370
      %v737 = vpop.f32.mrb[0].mxu0
      %v738 = vadd.f32 %v509, %v737
      %v739 = vpop.f32.mrb[0].mxu0
      %v740 = vpop.f32.mrb[0].mxu0
      %v741 = vadd.f32 %v512, %v740
      %v742 = vpop.f32.mrb[0].mxu0
      %743 = vmatprep.mubr.bf16.mxu0 0
      %744 = vmatmul.mubr.bf16.gmra.mrb[0].mxu0 %v373
      %v745 = vpop.f32.mrb[0].mxu0
      %v746 = vadd.f32 %v517, %v745
      %v747 = vpop.f32.mrb[0].mxu0
      %v748 = vpop.f32.mrb[0].mxu0
      %v749 = vadd.f32 %v520, %v748
      %v750 = vpop.f32.mrb[0].mxu0
      %751 = vmatprep.mubr.bf16.mxu0 0
      %752 = vmatmul.mubr.bf16.gmra.mrb[0].mxu0 %v376
      %v753 = vpop.f32.mrb[0].mxu0
      %v754 = vadd.f32 %v525, %v753
      %v755 = vpop.f32.mrb[0].mxu0
      %v756 = vpop.f32.mrb[0].mxu0
      %v757 = vadd.f32 %v528, %v756
      %v758 = vpop.f32.mrb[0].mxu0
      %759 = vmatprep.mubr.bf16.mxu0 0
      %760 = vmatmul.mubr.bf16.gmra.mrb[0].mxu0 %v379
      %v761 = vpop.f32.mrb[0].mxu0
      %v762 = vadd.f32 %v533, %v761
      %v763 = vpop.f32.mrb[0].mxu0
      %v764 = vpop.f32.mrb[0].mxu0
      %v765 = vadd.f32 %v536, %v764
      %v766 = vpop.f32.mrb[0].mxu0
      %767 = vmatprep.mubr.bf16.mxu0 0
      %768 = vmatmul.mubr.bf16.gmra.mrb[0].mxu0 %v382
      %v769 = vpop.f32.mrb[0].mxu0
      %v770 = vadd.f32 %v541, %v769
      %v771 = vpop.f32.mrb[0].mxu0
      %v772 = vpop.f32.mrb[0].mxu0
      %v773 = vadd.f32 %v544, %v772
      %v774 = vpop.f32.mrb[0].mxu0
      %775 = vmatprep.mubr.bf16.mxu0 0
      %776 = vmatmul.mubr.bf16.gmra.mrb[0].mxu0 %v385
      %v777 = vpop.f32.mrb[0].mxu0
      %v778 = vadd.f32 %v549, %v777
      %v779 = vpop.f32.mrb[0].mxu0
      %v780 = vpop.f32.mrb[0].mxu0
      %v781 = vadd.f32 %v552, %v780
      %v782 = vpop.f32.mrb[0].mxu0
      %783 = vmatprep.mubr.bf16.mxu0 0
      %784 = vmatmul.mubr.bf16.gmra.mrb[0].mxu0 %v388
      %v785 = vpop.f32.mrb[0].mxu0
      %v786 = vadd.f32 %v557, %v785
      %v787 = vpop.f32.mrb[0].mxu0
      %v788 = vpop.f32.mrb[0].mxu0
      %v789 = vadd.f32 %v560, %v788
      %v790 = vpop.f32.mrb[0].mxu0
      %791 = vdwg.mxu0
      %v792 = vld [vmem:[%s2] sm:$0x1]
      %v794 = vlaneseq
      %v795 = vshrl.u32 %v794, 7
      %v796 = vsub.s32 0, %v795
      %v797 = vrot.slane %v792, %v796
      %v799 = vadd.f32 %v666, %v797
      %v800 = vadd.f32 %v669, %v797
      %v801 = vadd.f32 %v674, %v797
      %v802 = vadd.f32 %v677, %v797
      %v803 = vadd.f32 %v682, %v797
      %v804 = vadd.f32 %v685, %v797
      %v805 = vadd.f32 %v690, %v797
      %v806 = vadd.f32 %v693, %v797
      %v807 = vadd.f32 %v698, %v797
      %v808 = vadd.f32 %v701, %v797
      %v809 = vadd.f32 %v706, %v797
      %v810 = vadd.f32 %v709, %v797
      %v811 = vadd.f32 %v714, %v797
      %v812 = vadd.f32 %v717, %v797
      %v813 = vadd.f32 %v722, %v797
      %v814 = vadd.f32 %v725, %v797
      %v815 = vadd.f32 %v730, %v797
      %v816 = vadd.f32 %v733, %v797
      %v817 = vadd.f32 %v738, %v797
      %v818 = vadd.f32 %v741, %v797
      %v819 = vadd.f32 %v746, %v797
      %v820 = vadd.f32 %v749, %v797
      %v821 = vadd.f32 %v754, %v797
      %v822 = vadd.f32 %v757, %v797
      %v823 = vadd.f32 %v762, %v797
      %v824 = vadd.f32 %v765, %v797
      %v825 = vadd.f32 %v770, %v797
      %v826 = vadd.f32 %v773, %v797
      %v827 = vadd.f32 %v778, %v797
      %v828 = vadd.f32 %v781, %v797
      %v829 = vadd.f32 %v786, %v797
      %v830 = vadd.f32 %v789, %v797
      %v831 = vmax.f32 %v799, 0.0
      %v832 = vmax.f32 %v800, 0.0
      %v833 = vmax.f32 %v801, 0.0
      %v834 = vmax.f32 %v802, 0.0
      %v835 = vmax.f32 %v803, 0.0
      %v836 = vmax.f32 %v804, 0.0
      %v837 = vmax.f32 %v805, 0.0
      %v838 = vmax.f32 %v806, 0.0
      %v839 = vmax.f32 %v807, 0.0
      %v840 = vmax.f32 %v808, 0.0
      %v841 = vmax.f32 %v809, 0.0
      %v842 = vmax.f32 %v810, 0.0
      %v843 = vmax.f32 %v811, 0.0
      %v844 = vmax.f32 %v812, 0.0
      %v845 = vmax.f32 %v813, 0.0
      %v846 = vmax.f32 %v814, 0.0
      %v847 = vmax.f32 %v815, 0.0
      %v848 = vmax.f32 %v816, 0.0
      %v849 = vmax.f32 %v817, 0.0
      %v850 = vmax.f32 %v818, 0.0
      %v851 = vmax.f32 %v819, 0.0
      %v852 = vmax.f32 %v820, 0.0
      %v853 = vmax.f32 %v821, 0.0
      %v854 = vmax.f32 %v822, 0.0
      %v855 = vmax.f32 %v823, 0.0
      %v856 = vmax.f32 %v824, 0.0
      %v857 = vmax.f32 %v825, 0.0
      %v858 = vmax.f32 %v826, 0.0
      %v859 = vmax.f32 %v827, 0.0
      %v860 = vmax.f32 %v828, 0.0
      %v861 = vmax.f32 %v829, 0.0
      %v862 = vmax.f32 %v830, 0.0
      %v863 = vpack.c.bf16 %v832, %v831
      %v864 = vpack.c.bf16 %v834, %v833
      %v865 = vpack.c.bf16 %v836, %v835
      %v866 = vpack.c.bf16 %v838, %v837
      %v867 = vpack.c.bf16 %v840, %v839
      %v868 = vpack.c.bf16 %v842, %v841
      %v869 = vpack.c.bf16 %v844, %v843
      %v870 = vpack.c.bf16 %v846, %v845
      %v871 = vpack.c.bf16 %v848, %v847
      %v872 = vpack.c.bf16 %v850, %v849
      %v873 = vpack.c.bf16 %v852, %v851
      %v874 = vpack.c.bf16 %v854, %v853
      %v875 = vpack.c.bf16 %v856, %v855
      %v876 = vpack.c.bf16 %v858, %v857
      %v877 = vpack.c.bf16 %v860, %v859
      %v878 = vpack.c.bf16 %v862, %v861
      %v895 = vunpack.c.l.b16 %v863
      %v896 = vunpack.c.h.b16 %v863
      %v897 = vunpack.c.l.b16 %v864
      %v898 = vunpack.c.h.b16 %v864
      %v899 = vunpack.c.l.b16 %v865
      %v900 = vunpack.c.h.b16 %v865
      %v901 = vunpack.c.l.b16 %v866
      %v902 = vunpack.c.h.b16 %v866
      %v903 = vunpack.c.l.b16 %v867
      %v904 = vunpack.c.h.b16 %v867
      %v905 = vunpack.c.l.b16 %v868
      %v906 = vunpack.c.h.b16 %v868
      %v907 = vunpack.c.l.b16 %v869
      %v908 = vunpack.c.h.b16 %v869
      %v909 = vunpack.c.l.b16 %v870
      %v910 = vunpack.c.h.b16 %v870
      %v911 = vunpack.c.l.b16 %v871
      %v912 = vunpack.c.h.b16 %v871
      %v913 = vunpack.c.l.b16 %v872
      %v914 = vunpack.c.h.b16 %v872
      %v915 = vunpack.c.l.b16 %v873
      %v916 = vunpack.c.h.b16 %v873
      %v917 = vunpack.c.l.b16 %v874
      %v918 = vunpack.c.h.b16 %v874
      %v919 = vunpack.c.l.b16 %v875
      %v920 = vunpack.c.h.b16 %v875
      %v921 = vunpack.c.l.b16 %v876
      %v922 = vunpack.c.h.b16 %v876
      %v923 = vunpack.c.l.b16 %v877
      %v924 = vunpack.c.h.b16 %v877
      %v925 = vunpack.c.l.b16 %v878
      %v926 = vunpack.c.h.b16 %v878
      %v927 = vpack.c.b16 %v895, %v895
      %v928 = vpack.c.b16 %v896, %v896
      %v929 = vpack.c.b16 %v897, %v897
      %v930 = vpack.c.b16 %v898, %v898
      %v931 = vpack.c.b16 %v899, %v899
      %v932 = vpack.c.b16 %v900, %v900
      %v933 = vpack.c.b16 %v901, %v901
      %v934 = vpack.c.b16 %v902, %v902
      %v935 = vpack.c.b16 %v903, %v903
      %v936 = vpack.c.b16 %v904, %v904
      %v937 = vpack.c.b16 %v905, %v905
      %v938 = vpack.c.b16 %v906, %v906
      %v939 = vpack.c.b16 %v907, %v907
      %v940 = vpack.c.b16 %v908, %v908
      %v941 = vpack.c.b16 %v909, %v909
      %v942 = vpack.c.b16 %v910, %v910
      %v943 = vpack.c.b16 %v911, %v911
      %v944 = vpack.c.b16 %v912, %v912
      %v945 = vpack.c.b16 %v913, %v913
      %v946 = vpack.c.b16 %v914, %v914
      %v947 = vpack.c.b16 %v915, %v915
      %v948 = vpack.c.b16 %v916, %v916
      %v949 = vpack.c.b16 %v917, %v917
      %v950 = vpack.c.b16 %v918, %v918
      %v951 = vpack.c.b16 %v919, %v919
      %v952 = vpack.c.b16 %v920, %v920
      %v953 = vpack.c.b16 %v921, %v921
      %v954 = vpack.c.b16 %v922, %v922
      %v955 = vpack.c.b16 %v923, %v923
      %v956 = vpack.c.b16 %v924, %v924
      %v957 = vpack.c.b16 %v925, %v925
      %v958 = vpack.c.b16 %v926, %v926
      %991 = vst [vmem:[%s170] sm:$0xf] %v927
      %992 = vst [vmem:[%s170 + $0x4] sm:$0xf] %v928
      %993 = vst [vmem:[%s170 + $0x8] sm:$0xf] %v929
      %994 = vst [vmem:[%s170 + $0xc] sm:$0xf] %v930
      %995 = vst [vmem:[%s170 + $0x10] sm:$0xf] %v931
      %996 = vst [vmem:[%s170 + $0x14] sm:$0xf] %v932
      %997 = vst [vmem:[%s170 + $0x18] sm:$0xf] %v933
      %998 = vst [vmem:[%s170 + $0x1c] sm:$0xf] %v934
      %999 = vst [vmem:[%s170 + $0x20] sm:$0xf] %v935
      %1000 = vst [vmem:[%s170 + $0x24] sm:$0xf] %v936
      %1001 = vst [vmem:[%s170 + $0x28] sm:$0xf] %v937
      %1002 = vst [vmem:[%s170 + $0x2c] sm:$0xf] %v938
      %1003 = vst [vmem:[%s170 + $0x30] sm:$0xf] %v939
      %1004 = vst [vmem:[%s170 + $0x34] sm:$0xf] %v940
      %1005 = vst [vmem:[%s170 + $0x38] sm:$0xf] %v941
      %1006 = vst [vmem:[%s170 + $0x3c] sm:$0xf] %v942
      %1007 = vst [vmem:[%s170 + $0x40] sm:$0xf] %v943
      %1008 = vst [vmem:[%s170 + $0x44] sm:$0xf] %v944
      %1009 = vst [vmem:[%s170 + $0x48] sm:$0xf] %v945
      %1010 = vst [vmem:[%s170 + $0x4c] sm:$0xf] %v946
      %1011 = vst [vmem:[%s170 + $0x50] sm:$0xf] %v947
      %1012 = vst [vmem:[%s170 + $0x54] sm:$0xf] %v948
      %1013 = vst [vmem:[%s170 + $0x58] sm:$0xf] %v949
      %1014 = vst [vmem:[%s170 + $0x5c] sm:$0xf] %v950
      %1015 = vst [vmem:[%s170 + $0x60] sm:$0xf] %v951
      %1016 = vst [vmem:[%s170 + $0x64] sm:$0xf] %v952
      %1017 = vst [vmem:[%s170 + $0x68] sm:$0xf] %v953
      %1018 = vst [vmem:[%s170 + $0x6c] sm:$0xf] %v954
      %1019 = vst [vmem:[%s170 + $0x70] sm:$0xf] %v955
      %1020 = vst [vmem:[%s170 + $0x74] sm:$0xf] %v956
      %1021 = vst [vmem:[%s170 + $0x78] sm:$0xf] %v957
      %1022 = vst [vmem:[%s170 + $0x7c] sm:$0xf] %v958
      %p1023 = scmp.lt.s32.totalorder %s14, 1
      %s1024 = scalar_select %p1023, %s14, 1
      %s1025 = smul.addr %s1024, 32
      %s1026 = smul.addr %s1025, 4
      %s1027 = scalar_lea.vmem %s3, %s1026
      // Predicated region
      $region33: #{encoder_forward.4} parent=31 // pred_check
        %p1028 = pneg %p100
      $region34: #{encoder_forward.4} parent=31 // pred_check_branch
        %1030 = sbr.rel (%p1028) target = $region36
      $region35: #{encoder_forward.4} parent=31 // pred_region
        _
      $region36: #{encoder_forward.4} parent=31 // pred_fallthru
        _
    $region32: #{encoder_forward.4} parent=5 // pred_fallthru
      _
    %p1031 = scmp.le.s32.totalorder 2, %s9
    // Predicated region
    $region37: #{encoder_forward.4} parent=5 // pred_check
      %p1032 = pneg %p1031
    $region38: #{encoder_forward.4} parent=5 // pred_check_branch
      %1034 = sbr.rel (%p1032) target = $region40
    $region39: #{encoder_forward.4} parent=5 // pred_region
      %s1035 = ssub.s32 %s9, 2
      // Predicated region
      $region41: #{encoder_forward.4} parent=39 // pred_check
        %p1036 = pneg %p106
      $region42: #{encoder_forward.4} parent=39 // pred_check_branch
        %1038 = sbr.rel (%p1036) target = $region44
      $region43: #{encoder_forward.4} parent=39 // pred_region
        %p1039 = scmp.lt.s32.totalorder %s15, 1
        %s1040 = scalar_select %p1039, %s15, 1
        %s1041 = smul.addr %s1040, 32
        %s1042 = smul.addr %s1041, 4
        %s1043 = scalar_lea.vmem %s3, %s1042
      $region44: #{encoder_forward.4} parent=39 // pred_fallthru
        _
    $region40: #{encoder_forward.4} parent=5 // pred_fallthru
      _
  $region6: #{encoder_forward.4} parent=0 // loop_footer
    %s13 = sadd.s32 1, %s9
  $region7: #{encoder_forward.4} parent=0 // loop_footer_branch
    %8 = sbr.rel target = $region3
  $region8: #{encoder_forward.4} parent=0 // loop_exit
    _

// kernel: encoder_forward.5
$region0: #{encoder_forward.5}
  #allocation0 [shape = 'u32[]', space=smem, size = 0x4, offset = 0x4, fixed_abs, tag = 'smem constant byte address 0x4 - core index']
  #allocation1 [shape = 'u32[144,128]{1,0:T(1,128)}', space=vmem, size = 0x12000, scoped, tag = 'internal scratch']
  %s0 = inlined_call_operand.vmem [shape: bf16[2,48,512], index: 0, kind: input, shape index: {}]
  %s1 = inlined_call_operand.vmem [shape: bf16[2,512,128], index: 1, kind: input, shape index: {}]
  %s2 = inlined_call_operand.vmem [shape: f32[1,128], index: 2, kind: input, shape index: {}]
  %s3 = inlined_call_operand.vmem [shape: bf16[2,32,128], index: 3, kind: output, shape index: {}]
  %s4 = sld [smem:[#allocation0]]
  $region45: #{encoder_forward.5} parent=0
    _
  %s6 = ssub.s32 1, %s4
  %s7 = scalar_select 0, %s6, %s4
  loop: start=0, step=1, limit=4
  $region2: #{encoder_forward.5} parent=0 // loop_pre_header
    _
  $region3: #{encoder_forward.5} parent=0 // loop_header
    %s9 = sphi 0, %s13
    %p10 = scmp.ge.s32.totalorder %s9, 4
    %s19 = sphi 0, %s21
    %s22 = sphi 0, %s19
    %s23 = sphi 0, %s22
    %s39 = sphi 0, %s23
    %s43 = sphi 0, %s43
    %s45 = sphi 0, %s43
    %s46 = sphi 0, %s45
    %s60 = sphi 0, %s46
    %s64 = sphi 0, %s64
    %s66 = sphi 0, %s64
    %s67 = sphi 0, %s66
    %s81 = sphi 0, %s67
    %s87 = sphi 0, %s89
    %s90 = sphi 0, %s87
    %s91 = sphi 0, %s90
    %s107 = sphi 0, %s91
  $region4: #{encoder_forward.5} parent=0 // loop_header_branch
    %12 = sbr.rel (%p10) target = $region8
  $region5: #{encoder_forward.5} parent=0 // loop_body
    %s14 = ssub.s32 %s9, 1
    %s15 = ssub.s32 %s9, 2
    %s16 = sadd.s32 %s9, 1
    %s17 = ssub.s32 %s9, %s16
    %p18 = scmp.eq.s32.totalorder %s17, 0
    %s20 = sadd.s32 %s19, 1
    %s21 = scalar_select %p18, %s19, %s20
    %p24 = pneg %p18
    %p25 = scmp.eq.s32.totalorder %s9, 1
    %p26 = por %p24, %p25
    %p27 = scmp.ne.s32.totalorder %s19, %s22
    %p28 = scmp.eq.s32.totalorder %s9, 0
    %p29 = por %p27, %p28
    %p30 = scmp.ne.s32.totalorder %s19, %s22
    %p31 = scmp.eq.s32.totalorder %s14, 1
    %p32 = por %p30, %p31
    %p33 = scmp.ne.s32.totalorder %s22, %s23
    %p34 = scmp.eq.s32.totalorder %s14, 0
    %p35 = por %p33, %p34
    %p36 = scmp.ne.s32.totalorder %s22, %s23
    %p37 = scmp.eq.s32.totalorder %s15, 1
    %p38 = por %p36, %p37
    %p40 = scmp.ne.s32.totalorder %s23, %s39
    %p41 = scmp.eq.s32.totalorder %s15, 0
    %p42 = por %p40, %p41
    %s44 = sadd.s32 %s43, 1
    %p47 = scmp.eq.s32.totalorder %s9, 1
    %p48 = scmp.ne.s32.totalorder %s43, %s45
    %p49 = scmp.eq.s32.totalorder %s9, 0
    %p50 = por %p48, %p49
    %p51 = scmp.ne.s32.totalorder %s43, %s45
    %p52 = scmp.eq.s32.totalorder %s14, 1
    %p53 = por %p51, %p52
    %p54 = scmp.ne.s32.totalorder %s45, %s46
    %p55 = scmp.eq.s32.totalorder %s14, 0
    %p56 = por %p54, %p55
    %p57 = scmp.ne.s32.totalorder %s45, %s46
    %p58 = scmp.eq.s32.totalorder %s15, 1
    %p59 = por %p57, %p58
    %p61 = scmp.ne.s32.totalorder %s46, %s60
    %p62 = scmp.eq.s32.totalorder %s15, 0
    %p63 = por %p61, %p62
    %s65 = sadd.s32 %s64, 1
    %p68 = scmp.eq.s32.totalorder %s9, 1
    %p69 = scmp.ne.s32.totalorder %s64, %s66
    %p70 = scmp.eq.s32.totalorder %s9, 0
    %p71 = por %p69, %p70
    %p72 = scmp.ne.s32.totalorder %s64, %s66
    %p73 = scmp.eq.s32.totalorder %s14, 1
    %p74 = por %p72, %p73
    %p75 = scmp.ne.s32.totalorder %s66, %s67
    %p76 = scmp.eq.s32.totalorder %s14, 0
    %p77 = por %p75, %p76
    %p78 = scmp.ne.s32.totalorder %s66, %s67
    %p79 = scmp.eq.s32.totalorder %s15, 1
    %p80 = por %p78, %p79
    %p82 = scmp.ne.s32.totalorder %s67, %s81
    %p83 = scmp.eq.s32.totalorder %s15, 0
    %p84 = por %p82, %p83
    %s85 = ssub.s32 %s9, %s16
    %p86 = scmp.eq.s32.totalorder %s85, 0
    %s88 = sadd.s32 %s87, 1
    %s89 = scalar_select %p86, %s87, %s88
    %p92 = pneg %p86
    %p93 = scmp.eq.s32.totalorder %s9, 1
    %p94 = por %p92, %p93
    %p95 = scmp.ne.s32.totalorder %s87, %s90
    %p96 = scmp.eq.s32.totalorder %s9, 0
    %p97 = por %p95, %p96
    %p98 = scmp.ne.s32.totalorder %s87, %s90
    %p99 = scmp.eq.s32.totalorder %s14, 1
    %p100 = por %p98, %p99
    %p101 = scmp.ne.s32.totalorder %s90, %s91
    %p102 = scmp.eq.s32.totalorder %s14, 0
    %p103 = por %p101, %p102
    %p104 = scmp.ne.s32.totalorder %s90, %s91
    %p105 = scmp.eq.s32.totalorder %s15, 1
    %p106 = por %p104, %p105
    %p108 = scmp.ne.s32.totalorder %s91, %s107
    %p109 = scmp.eq.s32.totalorder %s15, 0
    %p110 = por %p108, %p109
    %p111 = scmp.le.s32.totalorder 1, %s9
    %p112 = scmp.lt.s32.totalorder %s9, 3
    %p113 = pnand %p111, %p112
    %p114 = pneg %p113
    // Predicated region
    $region9: #{encoder_forward.5} parent=5 // pred_check
      _
    $region10: #{encoder_forward.5} parent=5 // pred_check_branch
      %116 = sbr.rel (%p113) target = $region12
    $region11: #{encoder_forward.5} parent=5 // pred_region
      %s117 = ssub.s32 %s9, 1
      // Predicated region
      $region13: #{encoder_forward.5} parent=11 // pred_check
        %p118 = pneg %p56
      $region14: #{encoder_forward.5} parent=11 // pred_check_branch
        %120 = sbr.rel (%p118) target = $region16
      $region15: #{encoder_forward.5} parent=11 // pred_region
        _
      $region16: #{encoder_forward.5} parent=11 // pred_fallthru
        _
      // Predicated region
      $region17: #{encoder_forward.5} parent=11 // pred_check
        %p121 = pneg %p77
      $region18: #{encoder_forward.5} parent=11 // pred_check_branch
        %123 = sbr.rel (%p121) target = $region20
      $region19: #{encoder_forward.5} parent=11 // pred_region
        _
      $region20: #{encoder_forward.5} parent=11 // pred_fallthru
        _
    $region12: #{encoder_forward.5} parent=5 // pred_fallthru
      _
    %p124 = scmp.lt.s32.totalorder %s9, 2
    // Predicated region
    $region21: #{encoder_forward.5} parent=5 // pred_check
      %p125 = pneg %p124
    $region22: #{encoder_forward.5} parent=5 // pred_check_branch
      %127 = sbr.rel (%p125) target = $region24
    $region23: #{encoder_forward.5} parent=5 // pred_region
      // Predicated region
      $region25: #{encoder_forward.5} parent=23 // pred_check
        %p128 = pneg %p29
      $region26: #{encoder_forward.5} parent=23 // pred_check_branch
        %130 = sbr.rel (%p128) target = $region28
      $region27: #{encoder_forward.5} parent=23 // pred_region
        %p131 = scmp.lt.s32.totalorder %s9, 1
        %s132 = scalar_select %p131, %s9, 1
        %s133 = smul.addr %s132, 24
        %s134 = smul.addr %s133, 4
        %s135 = scalar_lea.vmem %s0, %s134
      $region28: #{encoder_forward.5} parent=23 // pred_fallthru
        _
    $region24: #{encoder_forward.5} parent=5 // pred_fallthru
      _
    %p136 = scmp.le.s32.totalorder 1, %s9
    %p137 = scmp.lt.s32.totalorder %s9, 3
    %p138 = pnand %p136, %p137
    %p139 = pneg %p138
    // Predicated region
    $region29: #{encoder_forward.5} parent=5 // pred_check
      _
    $region30: #{encoder_forward.5} parent=5 // pred_check_branch
      %141 = sbr.rel (%p138) target = $region32
    $region31: #{encoder_forward.5} parent=5 // pred_region
      %s142 = ssub.s32 %s9, 1
      %p143 = scmp.lt.s32.totalorder %s14, 1
      %s144 = scalar_select %p143, %s14, 1
      %s145 = smul.addr %s144, 24
      %s146 = smul.addr %s145, 4
      %s147 = scalar_lea.vmem %s0, %s146
      %p148 = pneg %p35
      %p149 = pneg %p32
      %p150 = pneg %p56
      %p151 = pneg %p53
      %p152 = pneg %p77
      %p153 = pneg %p74
      %p154 = pneg %p103
      %p155 = pneg %p100
      %p156 = scmp.lt.s32.totalorder %s14, 1
      %s157 = scalar_select %p156, %s14, 1
      %s158 = smul.addr %s157, 4
      %s159 = smul.addr %s158, 4
      %s160 = scalar_lea.vmem %s3, %s159
      %p161 = scmp.lt.s32.totalorder %s14, 1
      %s162 = scalar_select %p161, %s14, 1
      %s163 = smul.addr %s162, 24
      %s164 = smul.addr %s163, 4
      %s165 = scalar_lea.vmem %s0, %s164
      %p166 = scmp.lt.s32.totalorder %s14, 1
      %s167 = scalar_select %p166, %s14, 1
      %s168 = smul.addr %s167, 4
      %s169 = smul.addr %s168, 4
      %s170 = scalar_lea.vmem %s3, %s169
      %v172 = vld [vmem:[%s165] sm:$0xff]
      %v173 = vld [vmem:[%s165 + $0x8] sm:$0xff]
      %v174 = vld [vmem:[%s165 + $0x10] sm:$0xff]
      %v175 = vld [vmem:[%s165 + $0x18] sm:$0xff]
      %v176 = vld [vmem:[%s165 + $0x20] sm:$0xff]
      %v177 = vld [vmem:[%s165 + $0x28] sm:$0xff]
      %v178 = vld [vmem:[%s165 + $0x30] sm:$0xff]
      %v179 = vld [vmem:[%s165 + $0x38] sm:$0xff]
      %v180 = vld [vmem:[%s1] sm:$0xf]
      %v181 = vld [vmem:[%s1 + $0x4] sm:$0xf]
      %v182 = vld [vmem:[%s1 + $0x8] sm:$0xf]
      %v183 = vld [vmem:[%s1 + $0xc] sm:$0xf]
      %v184 = vld [vmem:[%s1 + $0x10] sm:$0xf]
      %v185 = vld [vmem:[%s1 + $0x14] sm:$0xf]
      %v186 = vld [vmem:[%s1 + $0x18] sm:$0xf]
      %v187 = vld [vmem:[%s1 + $0x1c] sm:$0xf]
      %v188 = vld [vmem:[%s1 + $0x20] sm:$0xf]
      %v189 = vld [vmem:[%s1 + $0x24] sm:$0xf]
      %v190 = vld [vmem:[%s1 + $0x28] sm:$0xf]
      %v191 = vld [vmem:[%s1 + $0x2c] sm:$0xf]
      %v192 = vld [vmem:[%s1 + $0x30] sm:$0xf]
      %v193 = vld [vmem:[%s1 + $0x34] sm:$0xf]
      %v194 = vld [vmem:[%s1 + $0x38] sm:$0xf]
      %v195 = vld [vmem:[%s1 + $0x3c] sm:$0xf]
      %v196 = vld [vmem:[%s1 + $0x40] sm:$0xf]
      %v197 = vld [vmem:[%s1 + $0x44] sm:$0xf]
      %v198 = vld [vmem:[%s1 + $0x48] sm:$0xf]
      %v199 = vld [vmem:[%s1 + $0x4c] sm:$0xf]
      %v200 = vld [vmem:[%s1 + $0x50] sm:$0xf]
      %v201 = vld [vmem:[%s1 + $0x54] sm:$0xf]
      %v202 = vld [vmem:[%s1 + $0x58] sm:$0xf]
      %v203 = vld [vmem:[%s1 + $0x5c] sm:$0xf]
      %v204 = vld [vmem:[%s1 + $0x60] sm:$0xf]
      %v205 = vld [vmem:[%s1 + $0x64] sm:$0xf]
      %v206 = vld [vmem:[%s1 + $0x68] sm:$0xf]
      %v207 = vld [vmem:[%s1 + $0x6c] sm:$0xf]
      %v208 = vld [vmem:[%s1 + $0x70] sm:$0xf]
      %v209 = vld [vmem:[%s1 + $0x74] sm:$0xf]
      %v210 = vld [vmem:[%s1 + $0x78] sm:$0xf]
      %v211 = vld [vmem:[%s1 + $0x7c] sm:$0xf]
      %v212 = vld [vmem:[%s1 + $0x80] sm:$0xf]
      %v213 = vld [vmem:[%s1 + $0x84] sm:$0xf]
      %v214 = vld [vmem:[%s1 + $0x88] sm:$0xf]
      %v215 = vld [vmem:[%s1 + $0x8c] sm:$0xf]
      %v216 = vld [vmem:[%s1 + $0x90] sm:$0xf]
      %v217 = vld [vmem:[%s1 + $0x94] sm:$0xf]
      %v218 = vld [vmem:[%s1 + $0x98] sm:$0xf]
      %v219 = vld [vmem:[%s1 + $0x9c] sm:$0xf]
      %v220 = vld [vmem:[%s1 + $0xa0] sm:$0xf]
      %v221 = vld [vmem:[%s1 + $0xa4] sm:$0xf]
      %v222 = vld [vmem:[%s1 + $0xa8] sm:$0xf]
      %v223 = vld [vmem:[%s1 + $0xac] sm:$0xf]
      %v224 = vld [vmem:[%s1 + $0xb0] sm:$0xf]
      %v225 = vld [vmem:[%s1 + $0xb4] sm:$0xf]
      %v226 = vld [vmem:[%s1 + $0xb8] sm:$0xf]
      %v227 = vld [vmem:[%s1 + $0xbc] sm:$0xf]
      %v228 = vld [vmem:[%s1 + $0xc0] sm:$0xf]
      %v229 = vld [vmem:[%s1 + $0xc4] sm:$0xf]
      %v230 = vld [vmem:[%s1 + $0xc8] sm:$0xf]
      %v231 = vld [vmem:[%s1 + $0xcc] sm:$0xf]
      %v232 = vld [vmem:[%s1 + $0xd0] sm:$0xf]
      %v233 = vld [vmem:[%s1 + $0xd4] sm:$0xf]
      %v234 = vld [vmem:[%s1 + $0xd8] sm:$0xf]
      %v235 = vld [vmem:[%s1 + $0xdc] sm:$0xf]
      %v236 = vld [vmem:[%s1 + $0xe0] sm:$0xf]
      %v237 = vld [vmem:[%s1 + $0xe4] sm:$0xf]
      %v238 = vld [vmem:[%s1 + $0xe8] sm:$0xf]
      %v239 = vld [vmem:[%s1 + $0xec] sm:$0xf]
      %v240 = vld [vmem:[%s1 + $0xf0] sm:$0xf]
      %v241 = vld [vmem:[%s1 + $0xf4] sm:$0xf]
      %v242 = vld [vmem:[%s1 + $0xf8] sm:$0xf]
      %v243 = vld [vmem:[%s1 + $0xfc] sm:$0xf]
      %v244 = vld [vmem:[%s165 + $0x20] sm:$0xff]
      %v245 = vld [vmem:[%s165 + $0x28] sm:$0xff]
      %v246 = vld [vmem:[%s165 + $0x30] sm:$0xff]
      %v247 = vld [vmem:[%s165 + $0x38] sm:$0xff]
      %v248 = vld [vmem:[%s165 + $0x40] sm:$0xff]
      %v249 = vld [vmem:[%s165 + $0x48] sm:$0xff]
      %v250 = vld [vmem:[%s165 + $0x50] sm:$0xff]
      %v251 = vld [vmem:[%s165 + $0x58] sm:$0xff]
      %s252 = scalar_lea.vmem %s1, 256
      %v253 = vld [vmem:[%s252] sm:$0xf]
      %v254 = vld [vmem:[%s252 + $0x4] sm:$0xf]
      %v255 = vld [vmem:[%s252 + $0x8] sm:$0xf]
      %v256 = vld [vmem:[%s252 + $0xc] sm:$0xf]
      %v257 = vld [vmem:[%s252 + $0x10] sm:$0xf]
      %v258 = vld [vmem:[%s252 + $0x14] sm:$0xf]
      %v259 = vld [vmem:[%s252 + $0x18] sm:$0xf]
      %v260 = vld [vmem:[%s252 + $0x1c] sm:$0xf]
      %v261 = vld [vmem:[%s252 + $0x20] sm:$0xf]
      %v262 = vld [vmem:[%s252 + $0x24] sm:$0xf]
      %v263 = vld [vmem:[%s252 + $0x28] sm:$0xf]
      %v264 = vld [vmem:[%s252 + $0x2c] sm:$0xf]
      %v265 = vld [vmem:[%s252 + $0x30] sm:$0xf]
      %v266 = vld [vmem:[%s252 + $0x34] sm:$0xf]
      %v267 = vld [vmem:[%s252 + $0x38] sm:$0xf]
      %v268 = vld [vmem:[%s252 + $0x3c] sm:$0xf]
      %v269 = vld [vmem:[%s252 + $0x40] sm:$0xf]
      %v270 = vld [vmem:[%s252 + $0x44] sm:$0xf]
      %v271 = vld [vmem:[%s252 + $0x48] sm:$0xf]
      %v272 = vld [vmem:[%s252 + $0x4c] sm:$0xf]
      %v273 = vld [vmem:[%s252 + $0x50] sm:$0xf]
      %v274 = vld [vmem:[%s252 + $0x54] sm:$0xf]
      %v275 = vld [vmem:[%s252 + $0x58] sm:$0xf]
      %v276 = vld [vmem:[%s252 + $0x5c] sm:$0xf]
      %v277 = vld [vmem:[%s252 + $0x60] sm:$0xf]
      %v278 = vld [vmem:[%s252 + $0x64] sm:$0xf]
      %v279 = vld [vmem:[%s252 + $0x68] sm:$0xf]
      %v280 = vld [vmem:[%s252 + $0x6c] sm:$0xf]
      %v281 = vld [vmem:[%s252 + $0x70] sm:$0xf]
      %v282 = vld [vmem:[%s252 + $0x74] sm:$0xf]
      %v283 = vld [vmem:[%s252 + $0x78] sm:$0xf]
      %v284 = vld [vmem:[%s252 + $0x7c] sm:$0xf]
      %v285 = vld [vmem:[%s252 + $0x80] sm:$0xf]
      %v286 = vld [vmem:[%s252 + $0x84] sm:$0xf]
      %v287 = vld [vmem:[%s252 + $0x88] sm:$0xf]
      %v288 = vld [vmem:[%s252 + $0x8c] sm:$0xf]
      %v289 = vld [vmem:[%s252 + $0x90] sm:$0xf]
      %v290 = vld [vmem:[%s252 + $0x94] sm:$0xf]
      %v291 = vld [vmem:[%s252 + $0x98] sm:$0xf]
      %v292 = vld [vmem:[%s252 + $0x9c] sm:$0xf]
      %v293 = vld [vmem:[%s252 + $0xa0] sm:$0xf]
      %v294 = vld [vmem:[%s252 + $0xa4] sm:$0xf]
      %v295 = vld [vmem:[%s252 + $0xa8] sm:$0xf]
      %v296 = vld [vmem:[%s252 + $0xac] sm:$0xf]
      %v297 = vld [vmem:[%s252 + $0xb0] sm:$0xf]
      %v298 = vld [vmem:[%s252 + $0xb4] sm:$0xf]
      %v299 = vld [vmem:[%s252 + $0xb8] sm:$0xf]
      %v300 = vld [vmem:[%s252 + $0xbc] sm:$0xf]
      %v301 = vld [vmem:[%s252 + $0xc0] sm:$0xf]
      %v302 = vld [vmem:[%s252 + $0xc4] sm:$0xf]
      %v303 = vld [vmem:[%s252 + $0xc8] sm:$0xf]
      %v304 = vld [vmem:[%s252 + $0xcc] sm:$0xf]
      %v305 = vld [vmem:[%s252 + $0xd0] sm:$0xf]
      %v306 = vld [vmem:[%s252 + $0xd4] sm:$0xf]
      %v307 = vld [vmem:[%s252 + $0xd8] sm:$0xf]
      %v308 = vld [vmem:[%s252 + $0xdc] sm:$0xf]
      %v309 = vld [vmem:[%s252 + $0xe0] sm:$0xf]
      %v310 = vld [vmem:[%s252 + $0xe4] sm:$0xf]
      %v311 = vld [vmem:[%s252 + $0xe8] sm:$0xf]
      %v312 = vld [vmem:[%s252 + $0xec] sm:$0xf]
      %v313 = vld [vmem:[%s252 + $0xf0] sm:$0xf]
      %v314 = vld [vmem:[%s252 + $0xf4] sm:$0xf]
      %v315 = vld [vmem:[%s252 + $0xf8] sm:$0xf]
      %v316 = vld [vmem:[%s252 + $0xfc] sm:$0xf]
      %v325 = vunpack.c.l.b16 %v244
      %v326 = vunpack.c.h.b16 %v244
      %v327 = vunpack.c.l.b16 %v245
      %v328 = vunpack.c.h.b16 %v245
      %v329 = vunpack.c.l.b16 %v246
      %v330 = vunpack.c.h.b16 %v246
      %v331 = vunpack.c.l.b16 %v247
      %v332 = vunpack.c.h.b16 %v247
      %v333 = vunpack.c.l.b16 %v248
      %v334 = vunpack.c.h.b16 %v248
      %v335 = vunpack.c.l.b16 %v249
      %v336 = vunpack.c.h.b16 %v249
      %v337 = vunpack.c.l.b16 %v250
      %v338 = vunpack.c.h.b16 %v250
      %v339 = vunpack.c.l.b16 %v251
      %v340 = vunpack.c.h.b16 %v251
      %v341 = vpack.c.b16 %v329, %v325
      %v342 = vpack.c.b16 %v330, %v326
      %v343 = vpack.c.b16 %v331, %v327
      %v344 = vpack.c.b16 %v332, %v328
      %v345 = vpack.c.b16 %v337, %v333
      %v346 = vpack.c.b16 %v338, %v334
      %v347 = vpack.c.b16 %v339, %v335
      %v348 = vpack.c.b16 %v340, %v336
      %v421 = vunpack.c.l.b16 %v253
      %v422 = vunpack.c.l.b16 %v254
      %v423 = vunpack.c.l.b16 %v255
      %v424 = vunpack.c.l.b16 %v256
      %v425 = vunpack.c.l.b16 %v257
      %v426 = vunpack.c.l.b16 %v258
      %v427 = vunpack.c.l.b16 %v259
      %v428 = vunpack.c.l.b16 %v260
      %v429 = vunpack.c.l.b16 %v261
      %v430 = vunpack.c.l.b16 %v262
      %v431 = vunpack.c.l.b16 %v263
      %v432 = vunpack.c.l.b16 %v264
      %v433 = vunpack.c.l.b16 %v265
      %v434 = vunpack.c.l.b16 %v266
      %v435 = vunpack.c.l.b16 %v267
      %v436 = vunpack.c.l.b16 %v268
      %v437 = vunpack.c.l.b16 %v269
      %v438 = vunpack.c.l.b16 %v270
      %v439 = vunpack.c.l.b16 %v271
      %v440 = vunpack.c.l.b16 %v272
      %v441 = vunpack.c.l.b16 %v273
      %v442 = vunpack.c.l.b16 %v274
      %v443 = vunpack.c.l.b16 %v275
      %v444 = vunpack.c.l.b16 %v276
      %v445 = vunpack.c.l.b16 %v277
      %v446 = vunpack.c.l.b16 %v278
      %v447 = vunpack.c.l.b16 %v279
      %v448 = vunpack.c.l.b16 %v280
      %v449 = vunpack.c.l.b16 %v281
      %v450 = vunpack.c.l.b16 %v282
      %v451 = vunpack.c.l.b16 %v283
      %v452 = vunpack.c.l.b16 %v284
      %v453 = vunpack.c.l.b16 %v285
      %v454 = vunpack.c.l.b16 %v286
      %v455 = vunpack.c.l.b16 %v287
      %v456 = vunpack.c.l.b16 %v288
      %v457 = vunpack.c.l.b16 %v289
      %v458 = vunpack.c.l.b16 %v290
      %v459 = vunpack.c.l.b16 %v291
      %v460 = vunpack.c.l.b16 %v292
      %v461 = vunpack.c.l.b16 %v293
      %v462 = vunpack.c.l.b16 %v294
      %v463 = vunpack.c.l.b16 %v295
      %v464 = vunpack.c.l.b16 %v296
      %v465 = vunpack.c.l.b16 %v297
      %v466 = vunpack.c.l.b16 %v298
      %v467 = vunpack.c.l.b16 %v299
      %v468 = vunpack.c.l.b16 %v300
      %v469 = vunpack.c.l.b16 %v301
      %v470 = vunpack.c.l.b16 %v302
      %v471 = vunpack.c.l.b16 %v303
      %v472 = vunpack.c.l.b16 %v304
      %v473 = vunpack.c.l.b16 %v305
      %v474 = vunpack.c.l.b16 %v306
      %v475 = vunpack.c.l.b16 %v307
      %v476 = vunpack.c.l.b16 %v308
      %v477 = vunpack.c.l.b16 %v309
      %v478 = vunpack.c.l.b16 %v310
      %v479 = vunpack.c.l.b16 %v311
      %v480 = vunpack.c.l.b16 %v312
      %v481 = vunpack.c.l.b16 %v313
      %v482 = vunpack.c.l.b16 %v314
      %v483 = vunpack.c.l.b16 %v315
      %v484 = vunpack.c.l.b16 %v316
      %v485 = vpack.c.b16 %v422, %v421
      %v486 = vpack.c.b16 %v424, %v423
      %v487 = vpack.c.b16 %v426, %v425
      %v488 = vpack.c.b16 %v428, %v427
      %v489 = vpack.c.b16 %v430, %v429
      %v490 = vpack.c.b16 %v432, %v431
      %v491 = vpack.c.b16 %v434, %v433
      %v492 = vpack.c.b16 %v436, %v435
      %v493 = vpack.c.b16 %v438, %v437
      %v494 = vpack.c.b16 %v440, %v439
      %v495 = vpack.c.b16 %v442, %v441
      %v496 = vpack.c.b16 %v444, %v443
      %v497 = vpack.c.b16 %v446, %v445
      %v498 = vpack.c.b16 %v448, %v447
      %v499 = vpack.c.b16 %v450, %v449
      %v500 = vpack.c.b16 %v452, %v451
      %v501 = vpack.c.b16 %v454, %v453
      %v502 = vpack.c.b16 %v456, %v455
      %v503 = vpack.c.b16 %v458, %v457
      %v504 = vpack.c.b16 %v460, %v459
      %v505 = vpack.c.b16 %v462, %v461
      %v506 = vpack.c.b16 %v464, %v463
      %v507 = vpack.c.b16 %v466, %v465
      %v508 = vpack.c.b16 %v468, %v467
      %v509 = vpack.c.b16 %v470, %v469
      %v510 = vpack.c.b16 %v472, %v471
      %v511 = vpack.c.b16 %v474, %v473
      %v512 = vpack.c.b16 %v476, %v475
      %v513 = vpack.c.b16 %v478, %v477
      %v514 = vpack.c.b16 %v480, %v479
      %v515 = vpack.c.b16 %v482, %v481
      %v516 = vpack.c.b16 %v484, %v483
      %549 = vmatprep.subr.bf16.mxu0 0
      %550 = vmatpush1.bf16.msra.mxu0 %v485
      %551 = vmatprep.subr.bf16.mxu0 0
      %552 = vmatpush1.bf16.msra.mxu0 %v486
      %553 = vmatprep.subr.bf16.mxu0 0
      %554 = vmatpush1.bf16.msra.mxu0 %v487
      %555 = vmatprep.subr.bf16.mxu0 0
      %556 = vmatpush1.bf16.msra.mxu0 %v488
      %557 = vmatprep.subr.bf16.mxu0 0
      %558 = vmatpush1.bf16.msra.mxu0 %v489
      %559 = vmatprep.subr.bf16.mxu0 0
      %560 = vmatpush1.bf16.msra.mxu0 %v490
      %561 = vmatprep.subr.bf16.mxu0 0
      %562 = vmatpush1.bf16.msra.mxu0 %v491
      %563 = vmatprep.subr.bf16.mxu0 0
      %564 = vmatpush1.bf16.msra.mxu0 %v492
      %565 = vmatprep.subr.bf16.mxu0 0
      %566 = vmatpush1.bf16.msra.mxu0 %v493
      %567 = vmatprep.subr.bf16.mxu0 0
      %568 = vmatpush1.bf16.msra.mxu0 %v494
      %569 = vmatprep.subr.bf16.mxu0 0
      %570 = vmatpush1.bf16.msra.mxu0 %v495
      %571 = vmatprep.subr.bf16.mxu0 0
      %572 = vmatpush1.bf16.msra.mxu0 %v496
      %573 = vmatprep.subr.bf16.mxu0 0
      %574 = vmatpush1.bf16.msra.mxu0 %v497
      %575 = vmatprep.subr.bf16.mxu0 0
      %576 = vmatpush1.bf16.msra.mxu0 %v498
      %577 = vmatprep.subr.bf16.mxu0 0
      %578 = vmatpush1.bf16.msra.mxu0 %v499
      %579 = vmatprep.subr.bf16.mxu0 0
      %580 = vmatpush1.bf16.msra.mxu0 %v500
      %581 = vmatprep.mubr.bf16.mxu0 %v342
      %582 = vmatmul.mubr.bf16.gmra.mrb[0].mxu0 %v341
      %v583 = vpop.f32.mrb[0].mxu0
      %v584 = vadd.f32 0.0, %v583
      %v585 = vpop.f32.mrb[0].mxu0
      %v586 = vpop.f32.mrb[0].mxu0
      %v587 = vadd.f32 0.0, %v586
      %v588 = vpop.f32.mrb[0].mxu0
      %589 = vmatprep.mubr.bf16.mxu0 %v346
      %590 = vmatmul.mubr.bf16.gmra.mrb[0].mxu0 %v345
      %v591 = vpop.f32.mrb[0].mxu0
      %v592 = vadd.f32 0.0, %v591
      %v593 = vpop.f32.mrb[0].mxu0
      %v594 = vpop.f32.mrb[0].mxu0
      %v595 = vadd.f32 0.0, %v594
      %v596 = vpop.f32.mrb[0].mxu0
      %597 = vdwg.mxu0
      %598 = vmatprep.subr.bf16.mxu0 0
      %599 = vmatpush1.bf16.msra.mxu0 %v501
      %600 = vmatprep.subr.bf16.mxu0 0
      %601 = vmatpush1.bf16.msra.mxu0 %v502
      %602 = vmatprep.subr.bf16.mxu0 0
      %603 = vmatpush1.bf16.msra.mxu0 %v503
      %604 = vmatprep.subr.bf16.mxu0 0
      %605 = vmatpush1.bf16.msra.mxu0 %v504
      %606 = vmatprep.subr.bf16.mxu0 0
      %607 = vmatpush1.bf16.msra.mxu0 %v505
      %608 = vmatprep.subr.bf16.mxu0 0
      %609 = vmatpush1.bf16.msra.mxu0 %v506
      %610 = vmatprep.subr.bf16.mxu0 0
      %611 = vmatpush1.bf16.msra.mxu0 %v507
      %612 = vmatprep.subr.bf16.mxu0 0
      %613 = vmatpush1.bf16.msra.mxu0 %v508
      %614 = vmatprep.subr.bf16.mxu0 0
      %615 = vmatpush1.bf16.msra.mxu0 %v509
      %616 = vmatprep.subr.bf16.mxu0 0
      %617 = vmatpush1.bf16.msra.mxu0 %v510
      %618 = vmatprep.subr.bf16.mxu0 0
      %619 = vmatpush1.bf16.msra.mxu0 %v511
      %620 = vmatprep.subr.bf16.mxu0 0
      %621 = vmatpush1.bf16.msra.mxu0 %v512
      %622 = vmatprep.subr.bf16.mxu0 0
      %623 = vmatpush1.bf16.msra.mxu0 %v513
      %624 = vmatprep.subr.bf16.mxu0 0
      %625 = vmatpush1.bf16.msra.mxu0 %v514
      %626 = vmatprep.subr.bf16.mxu0 0
      %627 = vmatpush1.bf16.msra.mxu0 %v515
      %628 = vmatprep.subr.bf16.mxu0 0
      %629 = vmatpush1.bf16.msra.mxu0 %v516
      %630 = vmatprep.mubr.bf16.mxu0 %v344
      %631 = vmatmul.mubr.bf16.gmra.mrb[0].mxu0 %v343
      %v632 = vpop.f32.mrb[0].mxu0
      %v633 = vadd.f32 %v584, %v632
      %v634 = vpop.f32.mrb[0].mxu0
      %v635 = vpop.f32.mrb[0].mxu0
      %v636 = vadd.f32 %v587, %v635
      %v637 = vpop.f32.mrb[0].mxu0
      %638 = vmatprep.mubr.bf16.mxu0 %v348
      %639 = vmatmul.mubr.bf16.gmra.mrb[0].mxu0 %v347
      %v640 = vpop.f32.mrb[0].mxu0
      %v641 = vadd.f32 %v592, %v640
      %v642 = vpop.f32.mrb[0].mxu0
      %v643 = vpop.f32.mrb[0].mxu0
      %v644 = vadd.f32 %v595, %v643
      %v645 = vpop.f32.mrb[0].mxu0
      %646 = vdwg.mxu0
      %v655 = vunpack.c.l.b16 %v172
      %v656 = vunpack.c.h.b16 %v172
      %v657 = vunpack.c.l.b16 %v173
      %v658 = vunpack.c.h.b16 %v173
      %v659 = vunpack.c.l.b16 %v174
      %v660 = vunpack.c.h.b16 %v174
      %v661 = vunpack.c.l.b16 %v175
      %v662 = vunpack.c.h.b16 %v175
      %v663 = vunpack.c.l.b16 %v176
      %v664 = vunpack.c.h.b16 %v176
      %v665 = vunpack.c.l.b16 %v177
      %v666 = vunpack.c.h.b16 %v177
      %v667 = vunpack.c.l.b16 %v178
      %v668 = vunpack.c.h.b16 %v178
      %v669 = vunpack.c.l.b16 %v179
      %v670 = vunpack.c.h.b16 %v179
      %v671 = vpack.c.b16 %v659, %v655
      %v672 = vpack.c.b16 %v660, %v656
      %v673 = vpack.c.b16 %v661, %v657
      %v674 = vpack.c.b16 %v662, %v658
      %v675 = vpack.c.b16 %v667, %v663
      %v676 = vpack.c.b16 %v668, %v664
      %v677 = vpack.c.b16 %v669, %v665
      %v678 = vpack.c.b16 %v670, %v666
      %v751 = vunpack.c.l.b16 %v180
      %v752 = vunpack.c.l.b16 %v181
      %v753 = vunpack.c.l.b16 %v182
      %v754 = vunpack.c.l.b16 %v183
      %v755 = vunpack.c.l.b16 %v184
      %v756 = vunpack.c.l.b16 %v185
      %v757 = vunpack.c.l.b16 %v186
      %v758 = vunpack.c.l.b16 %v187
      %v759 = vunpack.c.l.b16 %v188
      %v760 = vunpack.c.l.b16 %v189
      %v761 = vunpack.c.l.b16 %v190
      %v762 = vunpack.c.l.b16 %v191
      %v763 = vunpack.c.l.b16 %v192
      %v764 = vunpack.c.l.b16 %v193
      %v765 = vunpack.c.l.b16 %v194
      %v766 = vunpack.c.l.b16 %v195
      %v767 = vunpack.c.l.b16 %v196
      %v768 = vunpack.c.l.b16 %v197
      %v769 = vunpack.c.l.b16 %v198
      %v770 = vunpack.c.l.b16 %v199
      %v771 = vunpack.c.l.b16 %v200
      %v772 = vunpack.c.l.b16 %v201
      %v773 = vunpack.c.l.b16 %v202
      %v774 = vunpack.c.l.b16 %v203
      %v775 = vunpack.c.l.b16 %v204
      %v776 = vunpack.c.l.b16 %v205
      %v777 = vunpack.c.l.b16 %v206
      %v778 = vunpack.c.l.b16 %v207
      %v779 = vunpack.c.l.b16 %v208
      %v780 = vunpack.c.l.b16 %v209
      %v781 = vunpack.c.l.b16 %v210
      %v782 = vunpack.c.l.b16 %v211
      %v783 = vunpack.c.l.b16 %v212
      %v784 = vunpack.c.l.b16 %v213
      %v785 = vunpack.c.l.b16 %v214
      %v786 = vunpack.c.l.b16 %v215
      %v787 = vunpack.c.l.b16 %v216
      %v788 = vunpack.c.l.b16 %v217
      %v789 = vunpack.c.l.b16 %v218
      %v790 = vunpack.c.l.b16 %v219
      %v791 = vunpack.c.l.b16 %v220
      %v792 = vunpack.c.l.b16 %v221
      %v793 = vunpack.c.l.b16 %v222
      %v794 = vunpack.c.l.b16 %v223
      %v795 = vunpack.c.l.b16 %v224
      %v796 = vunpack.c.l.b16 %v225
      %v797 = vunpack.c.l.b16 %v226
      %v798 = vunpack.c.l.b16 %v227
      %v799 = vunpack.c.l.b16 %v228
      %v800 = vunpack.c.l.b16 %v229
      %v801 = vunpack.c.l.b16 %v230
      %v802 = vunpack.c.l.b16 %v231
      %v803 = vunpack.c.l.b16 %v232
      %v804 = vunpack.c.l.b16 %v233
      %v805 = vunpack.c.l.b16 %v234
      %v806 = vunpack.c.l.b16 %v235
      %v807 = vunpack.c.l.b16 %v236
      %v808 = vunpack.c.l.b16 %v237
      %v809 = vunpack.c.l.b16 %v238
      %v810 = vunpack.c.l.b16 %v239
      %v811 = vunpack.c.l.b16 %v240
      %v812 = vunpack.c.l.b16 %v241
      %v813 = vunpack.c.l.b16 %v242
      %v814 = vunpack.c.l.b16 %v243
      %v815 = vpack.c.b16 %v752, %v751
      %v816 = vpack.c.b16 %v754, %v753
      %v817 = vpack.c.b16 %v756, %v755
      %v818 = vpack.c.b16 %v758, %v757
      %v819 = vpack.c.b16 %v760, %v759
      %v820 = vpack.c.b16 %v762, %v761
      %v821 = vpack.c.b16 %v764, %v763
      %v822 = vpack.c.b16 %v766, %v765
      %v823 = vpack.c.b16 %v768, %v767
      %v824 = vpack.c.b16 %v770, %v769
      %v825 = vpack.c.b16 %v772, %v771
      %v826 = vpack.c.b16 %v774, %v773
      %v827 = vpack.c.b16 %v776, %v775
      %v828 = vpack.c.b16 %v778, %v777
      %v829 = vpack.c.b16 %v780, %v779
      %v830 = vpack.c.b16 %v782, %v781
      %v831 = vpack.c.b16 %v784, %v783
      %v832 = vpack.c.b16 %v786, %v785
      %v833 = vpack.c.b16 %v788, %v787
      %v834 = vpack.c.b16 %v790, %v789
      %v835 = vpack.c.b16 %v792, %v791
      %v836 = vpack.c.b16 %v794, %v793
      %v837 = vpack.c.b16 %v796, %v795
      %v838 = vpack.c.b16 %v798, %v797
      %v839 = vpack.c.b16 %v800, %v799
      %v840 = vpack.c.b16 %v802, %v801
      %v841 = vpack.c.b16 %v804, %v803
      %v842 = vpack.c.b16 %v806, %v805
      %v843 = vpack.c.b16 %v808, %v807
      %v844 = vpack.c.b16 %v810, %v809
      %v845 = vpack.c.b16 %v812, %v811
      %v846 = vpack.c.b16 %v814, %v813
      %879 = vmatprep.subr.bf16.mxu0 0
      %880 = vmatpush1.bf16.msra.mxu0 %v815
      %881 = vmatprep.subr.bf16.mxu0 0
      %882 = vmatpush1.bf16.msra.mxu0 %v816
      %883 = vmatprep.subr.bf16.mxu0 0
      %884 = vmatpush1.bf16.msra.mxu0 %v817
      %885 = vmatprep.subr.bf16.mxu0 0
      %886 = vmatpush1.bf16.msra.mxu0 %v818
      %887 = vmatprep.subr.bf16.mxu0 0
      %888 = vmatpush1.bf16.msra.mxu0 %v819
      %889 = vmatprep.subr.bf16.mxu0 0
      %890 = vmatpush1.bf16.msra.mxu0 %v820
      %891 = vmatprep.subr.bf16.mxu0 0
      %892 = vmatpush1.bf16.msra.mxu0 %v821
      %893 = vmatprep.subr.bf16.mxu0 0
      %894 = vmatpush1.bf16.msra.mxu0 %v822
      %895 = vmatprep.subr.bf16.mxu0 0
      %896 = vmatpush1.bf16.msra.mxu0 %v823
      %897 = vmatprep.subr.bf16.mxu0 0
      %898 = vmatpush1.bf16.msra.mxu0 %v824
      %899 = vmatprep.subr.bf16.mxu0 0
      %900 = vmatpush1.bf16.msra.mxu0 %v825
      %901 = vmatprep.subr.bf16.mxu0 0
      %902 = vmatpush1.bf16.msra.mxu0 %v826
      %903 = vmatprep.subr.bf16.mxu0 0
      %904 = vmatpush1.bf16.msra.mxu0 %v827
      %905 = vmatprep.subr.bf16.mxu0 0
      %906 = vmatpush1.bf16.msra.mxu0 %v828
      %907 = vmatprep.subr.bf16.mxu0 0
      %908 = vmatpush1.bf16.msra.mxu0 %v829
      %909 = vmatprep.subr.bf16.mxu0 0
      %910 = vmatpush1.bf16.msra.mxu0 %v830
      %911 = vmatprep.mubr.bf16.mxu0 %v672
      %912 = vmatmul.mubr.bf16.gmra.mrb[0].mxu0 %v671
      %v913 = vpop.f32.mrb[0].mxu0
      %v914 = vadd.f32 %v633, %v913
      %v915 = vpop.f32.mrb[0].mxu0
      %v916 = vpop.f32.mrb[0].mxu0
      %v917 = vadd.f32 %v636, %v916
      %v918 = vpop.f32.mrb[0].mxu0
      %919 = vmatprep.mubr.bf16.mxu0 %v676
      %920 = vmatmul.mubr.bf16.gmra.mrb[0].mxu0 %v675
      %v921 = vpop.f32.mrb[0].mxu0
      %v922 = vadd.f32 %v641, %v921
      %v923 = vpop.f32.mrb[0].mxu0
      %v924 = vpop.f32.mrb[0].mxu0
      %v925 = vadd.f32 %v644, %v924
      %v926 = vpop.f32.mrb[0].mxu0
      %927 = vdwg.mxu0
      %928 = vmatprep.subr.bf16.mxu0 0
      %929 = vmatpush1.bf16.msra.mxu0 %v831
      %930 = vmatprep.subr.bf16.mxu0 0
      %931 = vmatpush1.bf16.msra.mxu0 %v832
      %932 = vmatprep.subr.bf16.mxu0 0
      %933 = vmatpush1.bf16.msra.mxu0 %v833
      %934 = vmatprep.subr.bf16.mxu0 0
      %935 = vmatpush1.bf16.msra.mxu0 %v834
      %936 = vmatprep.subr.bf16.mxu0 0
      %937 = vmatpush1.bf16.msra.mxu0 %v835
      %938 = vmatprep.subr.bf16.mxu0 0
      %939 = vmatpush1.bf16.msra.mxu0 %v836
      %940 = vmatprep.subr.bf16.mxu0 0
      %941 = vmatpush1.bf16.msra.mxu0 %v837
      %942 = vmatprep.subr.bf16.mxu0 0
      %943 = vmatpush1.bf16.msra.mxu0 %v838
      %944 = vmatprep.subr.bf16.mxu0 0
      %945 = vmatpush1.bf16.msra.mxu0 %v839
      %946 = vmatprep.subr.bf16.mxu0 0
      %947 = vmatpush1.bf16.msra.mxu0 %v840
      %948 = vmatprep.subr.bf16.mxu0 0
      %949 = vmatpush1.bf16.msra.mxu0 %v841
      %950 = vmatprep.subr.bf16.mxu0 0
      %951 = vmatpush1.bf16.msra.mxu0 %v842
      %952 = vmatprep.subr.bf16.mxu0 0
      %953 = vmatpush1.bf16.msra.mxu0 %v843
      %954 = vmatprep.subr.bf16.mxu0 0
      %955 = vmatpush1.bf16.msra.mxu0 %v844
      %956 = vmatprep.subr.bf16.mxu0 0
      %957 = vmatpush1.bf16.msra.mxu0 %v845
      %958 = vmatprep.subr.bf16.mxu0 0
      %959 = vmatpush1.bf16.msra.mxu0 %v846
      %960 = vmatprep.mubr.bf16.mxu0 %v674
      %961 = vmatmul.mubr.bf16.gmra.mrb[0].mxu0 %v673
      %v962 = vpop.f32.mrb[0].mxu0
      %v963 = vadd.f32 %v914, %v962
      %v964 = vpop.f32.mrb[0].mxu0
      %v965 = vpop.f32.mrb[0].mxu0
      %v966 = vadd.f32 %v917, %v965
      %v967 = vpop.f32.mrb[0].mxu0
      %968 = vmatprep.mubr.bf16.mxu0 %v678
      %969 = vmatmul.mubr.bf16.gmra.mrb[0].mxu0 %v677
      %v970 = vpop.f32.mrb[0].mxu0
      %v971 = vadd.f32 %v922, %v970
      %v972 = vpop.f32.mrb[0].mxu0
      %v973 = vpop.f32.mrb[0].mxu0
      %v974 = vadd.f32 %v925, %v973
      %v975 = vpop.f32.mrb[0].mxu0
      %976 = vdwg.mxu0
      %v977 = vld [vmem:[%s2] sm:$0x1]
      %v979 = vlaneseq
      %v980 = vshrl.u32 %v979, 7
      %v981 = vsub.s32 0, %v980
      %v982 = vrot.slane %v977, %v981
      %v984 = vadd.f32 %v963, %v982
      %v985 = vadd.f32 %v966, %v982
      %v986 = vadd.f32 %v971, %v982
      %v987 = vadd.f32 %v974, %v982
      %v988 = vmax.f32 %v984, 0.0
      %v989 = vmax.f32 %v985, 0.0
      %v990 = vmax.f32 %v986, 0.0
      %v991 = vmax.f32 %v987, 0.0
      %v992 = vpack.c.bf16 %v989, %v988
      %v993 = vpack.c.bf16 %v991, %v990
      %v996 = vunpack.c.l.b16 %v992
      %v997 = vunpack.c.h.b16 %v992
      %v998 = vunpack.c.l.b16 %v993
      %v999 = vunpack.c.h.b16 %v993
      %v1000 = vpack.c.b16 %v996, %v996
      %v1001 = vpack.c.b16 %v997, %v997
      %v1002 = vpack.c.b16 %v998, %v998
      %v1003 = vpack.c.b16 %v999, %v999
      %1008 = vst [vmem:[%s170] sm:$0xf] %v1000
      %1009 = vst [vmem:[%s170 + $0x4] sm:$0xf] %v1001
      %1010 = vst [vmem:[%s170 + $0x8] sm:$0xf] %v1002
      %1011 = vst [vmem:[%s170 + $0xc] sm:$0xf] %v1003
      %p1012 = scmp.lt.s32.totalorder %s14, 1
      %s1013 = scalar_select %p1012, %s14, 1
      %s1014 = smul.addr %s1013, 4
      %s1015 = smul.addr %s1014, 4
      %s1016 = scalar_lea.vmem %s3, %s1015
      // Predicated region
      $region33: #{encoder_forward.5} parent=31 // pred_check
        %p1017 = pneg %p100
      $region34: #{encoder_forward.5} parent=31 // pred_check_branch
        %1019 = sbr.rel (%p1017) target = $region36
      $region35: #{encoder_forward.5} parent=31 // pred_region
        _
      $region36: #{encoder_forward.5} parent=31 // pred_fallthru
        _
    $region32: #{encoder_forward.5} parent=5 // pred_fallthru
      _
    %p1020 = scmp.le.s32.totalorder 2, %s9
    // Predicated region
    $region37: #{encoder_forward.5} parent=5 // pred_check
      %p1021 = pneg %p1020
    $region38: #{encoder_forward.5} parent=5 // pred_check_branch
      %1023 = sbr.rel (%p1021) target = $region40
    $region39: #{encoder_forward.5} parent=5 // pred_region
      %s1024 = ssub.s32 %s9, 2
      // Predicated region
      $region41: #{encoder_forward.5} parent=39 // pred_check
        %p1025 = pneg %p106
      $region42: #{encoder_forward.5} parent=39 // pred_check_branch
        %1027 = sbr.rel (%p1025) target = $region44
      $region43: #{encoder_forward.5} parent=39 // pred_region
        %p1028 = scmp.lt.s32.totalorder %s15, 1
        %s1029 = scalar_select %p1028, %s15, 1
        %s1030 = smul.addr %s1029, 4
        %s1031 = smul.addr %s1030, 4
        %s1032 = scalar_lea.vmem %s3, %s1031
      $region44: #{encoder_forward.5} parent=39 // pred_fallthru
        _
    $region40: #{encoder_forward.5} parent=5 // pred_fallthru
      _
  $region6: #{encoder_forward.5} parent=0 // loop_footer
    %s13 = sadd.s32 1, %s9
  $region7: #{encoder_forward.5} parent=0 // loop_footer_branch
    %8 = sbr.rel target = $region3
  $region8: #{encoder_forward.5} parent=0 // loop_exit
    _

// kernel: encoder_forward.6
$region0: #{encoder_forward.6}
  #allocation0 [shape = 'u32[]', space=smem, size = 0x4, offset = 0x4, fixed_abs, tag = 'smem constant byte address 0x4 - core index']
  #allocation1 [shape = 'u32[144,128]{1,0:T(1,128)}', space=vmem, size = 0x12000, scoped, tag = 'internal scratch']
  %s0 = inlined_call_operand.vmem [shape: bf16[2,64,144], index: 0, kind: input, shape index: {}]
  %s1 = inlined_call_operand.vmem [shape: bf16[3,144,128], index: 1, kind: input, shape index: {}]
  %s2 = inlined_call_operand.vmem [shape: f32[1,128], index: 2, kind: input, shape index: {}]
  %s3 = inlined_call_operand.vmem [shape: bf16[2,32,128], index: 3, kind: output, shape index: {0}]
  %s4 = inlined_call_operand.vmem [shape: f32[2,2,128], index: 4, kind: output, shape index: {1}]
  %5 = xla_tuple %s3, %s4
  %s6 = sld [smem:[#allocation0]]
  $region53: #{encoder_forward.6} parent=0
    _
  %s8 = ssub.s32 1, %s6
  %s9 = scalar_select 0, %s8, %s6
  loop: start=0, step=1, limit=4
  $region2: #{encoder_forward.6} parent=0 // loop_pre_header
    _
  $region3: #{encoder_forward.6} parent=0 // loop_header
    %s11 = sphi 0, %s15
    %p12 = scmp.ge.s32.totalorder %s11, 4
    %s21 = sphi 0, %s23
    %s24 = sphi 0, %s21
    %s25 = sphi 0, %s24
    %s41 = sphi 0, %s25
    %s45 = sphi 0, %s45
    %s47 = sphi 0, %s45
    %s48 = sphi 0, %s47
    %s62 = sphi 0, %s48
    %s66 = sphi 0, %s66
    %s68 = sphi 0, %s66
    %s69 = sphi 0, %s68
    %s83 = sphi 0, %s69
    %s89 = sphi 0, %s91
    %s92 = sphi 0, %s89
    %s93 = sphi 0, %s92
    %s109 = sphi 0, %s93
    %s115 = sphi 0, %s117
    %s118 = sphi 0, %s115
    %s119 = sphi 0, %s118
    %s135 = sphi 0, %s119
  $region4: #{encoder_forward.6} parent=0 // loop_header_branch
    %14 = sbr.rel (%p12) target = $region8
  $region5: #{encoder_forward.6} parent=0 // loop_body
    %s16 = ssub.s32 %s11, 1
    %s17 = ssub.s32 %s11, 2
    %s18 = sadd.s32 %s11, 1
    %s19 = ssub.s32 %s11, %s18
    %p20 = scmp.eq.s32.totalorder %s19, 0
    %s22 = sadd.s32 %s21, 1
    %s23 = scalar_select %p20, %s21, %s22
    %p26 = pneg %p20
    %p27 = scmp.eq.s32.totalorder %s11, 1
    %p28 = por %p26, %p27
    %p29 = scmp.ne.s32.totalorder %s21, %s24
    %p30 = scmp.eq.s32.totalorder %s11, 0
    %p31 = por %p29, %p30
    %p32 = scmp.ne.s32.totalorder %s21, %s24
    %p33 = scmp.eq.s32.totalorder %s16, 1
    %p34 = por %p32, %p33
    %p35 = scmp.ne.s32.totalorder %s24, %s25
    %p36 = scmp.eq.s32.totalorder %s16, 0
    %p37 = por %p35, %p36
    %p38 = scmp.ne.s32.totalorder %s24, %s25
    %p39 = scmp.eq.s32.totalorder %s17, 1
    %p40 = por %p38, %p39
    %p42 = scmp.ne.s32.totalorder %s25, %s41
    %p43 = scmp.eq.s32.totalorder %s17, 0
    %p44 = por %p42, %p43
    %s46 = sadd.s32 %s45, 1
    %p49 = scmp.eq.s32.totalorder %s11, 1
    %p50 = scmp.ne.s32.totalorder %s45, %s47
    %p51 = scmp.eq.s32.totalorder %s11, 0
    %p52 = por %p50, %p51
    %p53 = scmp.ne.s32.totalorder %s45, %s47
    %p54 = scmp.eq.s32.totalorder %s16, 1
    %p55 = por %p53, %p54
    %p56 = scmp.ne.s32.totalorder %s47, %s48
    %p57 = scmp.eq.s32.totalorder %s16, 0
    %p58 = por %p56, %p57
    %p59 = scmp.ne.s32.totalorder %s47, %s48
    %p60 = scmp.eq.s32.totalorder %s17, 1
    %p61 = por %p59, %p60
    %p63 = scmp.ne.s32.totalorder %s48, %s62
    %p64 = scmp.eq.s32.totalorder %s17, 0
    %p65 = por %p63, %p64
    %s67 = sadd.s32 %s66, 1
    %p70 = scmp.eq.s32.totalorder %s11, 1
    %p71 = scmp.ne.s32.totalorder %s66, %s68
    %p72 = scmp.eq.s32.totalorder %s11, 0
    %p73 = por %p71, %p72
    %p74 = scmp.ne.s32.totalorder %s66, %s68
    %p75 = scmp.eq.s32.totalorder %s16, 1
    %p76 = por %p74, %p75
    %p77 = scmp.ne.s32.totalorder %s68, %s69
    %p78 = scmp.eq.s32.totalorder %s16, 0
    %p79 = por %p77, %p78
    %p80 = scmp.ne.s32.totalorder %s68, %s69
    %p81 = scmp.eq.s32.totalorder %s17, 1
    %p82 = por %p80, %p81
    %p84 = scmp.ne.s32.totalorder %s69, %s83
    %p85 = scmp.eq.s32.totalorder %s17, 0
    %p86 = por %p84, %p85
    %s87 = ssub.s32 %s11, %s18
    %p88 = scmp.eq.s32.totalorder %s87, 0
    %s90 = sadd.s32 %s89, 1
    %s91 = scalar_select %p88, %s89, %s90
    %p94 = pneg %p88
    %p95 = scmp.eq.s32.totalorder %s11, 1
    %p96 = por %p94, %p95
    %p97 = scmp.ne.s32.totalorder %s89, %s92
    %p98 = scmp.eq.s32.totalorder %s11, 0
    %p99 = por %p97, %p98
    %p100 = scmp.ne.s32.totalorder %s89, %s92
    %p101 = scmp.eq.s32.totalorder %s16, 1
    %p102 = por %p100, %p101
    %p103 = scmp.ne.s32.totalorder %s92, %s93
    %p104 = scmp.eq.s32.totalorder %s16, 0
    %p105 = por %p103, %p104
    %p106 = scmp.ne.s32.totalorder %s92, %s93
    %p107 = scmp.eq.s32.totalorder %s17, 1
    %p108 = por %p106, %p107
    %p110 = scmp.ne.s32.totalorder %s93, %s109
    %p111 = scmp.eq.s32.totalorder %s17, 0
    %p112 = por %p110, %p111
    %s113 = ssub.s32 %s11, %s18
    %p114 = scmp.eq.s32.totalorder %s113, 0
    %s116 = sadd.s32 %s115, 1
    %s117 = scalar_select %p114, %s115, %s116
    %p120 = pneg %p114
    %p121 = scmp.eq.s32.totalorder %s11, 1
    %p122 = por %p120, %p121
    %p123 = scmp.ne.s32.totalorder %s115, %s118
    %p124 = scmp.eq.s32.totalorder %s11, 0
    %p125 = por %p123, %p124
    %p126 = scmp.ne.s32.totalorder %s115, %s118
    %p127 = scmp.eq.s32.totalorder %s16, 1
    %p128 = por %p126, %p127
    %p129 = scmp.ne.s32.totalorder %s118, %s119
    %p130 = scmp.eq.s32.totalorder %s16, 0
    %p131 = por %p129, %p130
    %p132 = scmp.ne.s32.totalorder %s118, %s119
    %p133 = scmp.eq.s32.totalorder %s17, 1
    %p134 = por %p132, %p133
    %p136 = scmp.ne.s32.totalorder %s119, %s135
    %p137 = scmp.eq.s32.totalorder %s17, 0
    %p138 = por %p136, %p137
    %p139 = scmp.le.s32.totalorder 1, %s11
    %p140 = scmp.lt.s32.totalorder %s11, 3
    %p141 = pnand %p139, %p140
    %p142 = pneg %p141
    // Predicated region
    $region9: #{encoder_forward.6} parent=5 // pred_check
      _
    $region10: #{encoder_forward.6} parent=5 // pred_check_branch
      %144 = sbr.rel (%p141) target = $region12
    $region11: #{encoder_forward.6} parent=5 // pred_region
      %s145 = ssub.s32 %s11, 1
      // Predicated region
      $region13: #{encoder_forward.6} parent=11 // pred_check
        %p146 = pneg %p58
      $region14: #{encoder_forward.6} parent=11 // pred_check_branch
        %148 = sbr.rel (%p146) target = $region16
      $region15: #{encoder_forward.6} parent=11 // pred_region
        _
      $region16: #{encoder_forward.6} parent=11 // pred_fallthru
        _
      // Predicated region
      $region17: #{encoder_forward.6} parent=11 // pred_check
        %p149 = pneg %p79
      $region18: #{encoder_forward.6} parent=11 // pred_check_branch
        %151 = sbr.rel (%p149) target = $region20
      $region19: #{encoder_forward.6} parent=11 // pred_region
        _
      $region20: #{encoder_forward.6} parent=11 // pred_fallthru
        _
    $region12: #{encoder_forward.6} parent=5 // pred_fallthru
      _
    %p152 = scmp.lt.s32.totalorder %s11, 2
    // Predicated region
    $region21: #{encoder_forward.6} parent=5 // pred_check
      %p153 = pneg %p152
    $region22: #{encoder_forward.6} parent=5 // pred_check_branch
      %155 = sbr.rel (%p153) target = $region24
    $region23: #{encoder_forward.6} parent=5 // pred_region
      // Predicated region
      $region25: #{encoder_forward.6} parent=23 // pred_check
        %p156 = pneg %p31
      $region26: #{encoder_forward.6} parent=23 // pred_check_branch
        %158 = sbr.rel (%p156) target = $region28
      $region27: #{encoder_forward.6} parent=23 // pred_region
        %p159 = scmp.lt.s32.totalorder %s11, 1
        %s160 = scalar_select %p159, %s11, 1
        %s161 = smul.addr %s160, 16
        %s162 = smul.addr %s161, 4
        %s163 = scalar_lea.vmem %s0, %s162
      $region28: #{encoder_forward.6} parent=23 // pred_fallthru
        _
    $region24: #{encoder_forward.6} parent=5 // pred_fallthru
      _
    %p164 = scmp.le.s32.totalorder 1, %s11
    %p165 = scmp.lt.s32.totalorder %s11, 3
    %p166 = pnand %p164, %p165
    %p167 = pneg %p166
    // Predicated region
    $region29: #{encoder_forward.6} parent=5 // pred_check
      _
    $region30: #{encoder_forward.6} parent=5 // pred_check_branch
      %169 = sbr.rel (%p166) target = $region32
    $region31: #{encoder_forward.6} parent=5 // pred_region
      %s170 = ssub.s32 %s11, 1
      %p171 = scmp.lt.s32.totalorder %s16, 1
      %s172 = scalar_select %p171, %s16, 1
      %s173 = smul.addr %s172, 16
      %s174 = smul.addr %s173, 4
      %s175 = scalar_lea.vmem %s0, %s174
      %p176 = pneg %p37
      %p177 = pneg %p34
      %p178 = pneg %p58
      %p179 = pneg %p55
      %p180 = pneg %p79
      %p181 = pneg %p76
      %p182 = pneg %p105
      %p183 = pneg %p102
      %p184 = scmp.lt.s32.totalorder %s16, 1
      %s185 = scalar_select %p184, %s16, 1
      %s186 = smul.addr %s185, 4
      %s187 = smul.addr %s186, 4
      %s188 = scalar_lea.vmem %s3, %s187
      %p189 = pneg %p131
      %p190 = pneg %p128
      %p191 = scmp.lt.s32.totalorder %s16, 1
      %s192 = scalar_select %p191, %s16, 1
      %s193 = smul.addr %s192, 2
      %s194 = scalar_lea.vmem %s4, %s193
      %p195 = scmp.lt.s32.totalorder %s16, 1
      %s196 = scalar_select %p195, %s16, 1
      %s197 = smul.addr %s196, 16
      %s198 = smul.addr %s197, 4
      %s199 = scalar_lea.vmem %s0, %s198
      %p200 = scmp.lt.s32.totalorder %s16, 1
      %s201 = scalar_select %p200, %s16, 1
      %s202 = smul.addr %s201, 4
      %s203 = smul.addr %s202, 4
      %s204 = scalar_lea.vmem %s3, %s203
      %p205 = scmp.lt.s32.totalorder %s16, 1
      %s206 = scalar_select %p205, %s16, 1
      %s207 = smul.addr %s206, 2
      %s208 = scalar_lea.vmem %s4, %s207
      %v210 = vld [vmem:[%s199] sm:$0xff]
      %v211 = vld [vmem:[%s199 + $0x8] sm:$0xff]
      %v212 = vld [vmem:[%s199 + $0x10] sm:$0xff]
      %v213 = vld [vmem:[%s199 + $0x18] sm:$0xff]
      %v214 = vld [vmem:[%s1] sm:$0xf]
      %v215 = vld [vmem:[%s1 + $0x4] sm:$0xf]
      %v216 = vld [vmem:[%s1 + $0x8] sm:$0xf]
      %v217 = vld [vmem:[%s1 + $0xc] sm:$0xf]
      %v218 = vld [vmem:[%s1 + $0x10] sm:$0xf]
      %v219 = vld [vmem:[%s1 + $0x14] sm:$0xf]
      %v220 = vld [vmem:[%s1 + $0x18] sm:$0xf]
      %v221 = vld [vmem:[%s1 + $0x1c] sm:$0xf]
      %v222 = vld [vmem:[%s1 + $0x20] sm:$0xf]
      %v223 = vld [vmem:[%s1 + $0x24] sm:$0xf]
      %v224 = vld [vmem:[%s1 + $0x28] sm:$0xf]
      %v225 = vld [vmem:[%s1 + $0x2c] sm:$0xf]
      %v226 = vld [vmem:[%s1 + $0x30] sm:$0xf]
      %v227 = vld [vmem:[%s1 + $0x34] sm:$0xf]
      %v228 = vld [vmem:[%s1 + $0x38] sm:$0xf]
      %v229 = vld [vmem:[%s1 + $0x3c] sm:$0xf]
      %v230 = vld [vmem:[%s1 + $0x40] sm:$0xf]
      %v231 = vld [vmem:[%s1 + $0x44] sm:$0xf]
      %v232 = vld [vmem:[%s199 + $0x20] sm:$0xff]
      %v233 = vld [vmem:[%s199 + $0x28] sm:$0xff]
      %s234 = scalar_lea.vmem %s1, 72
      %v235 = vld [vmem:[%s234] sm:$0xf]
      %v236 = vld [vmem:[%s234 + $0x4] sm:$0xf]
      %v237 = vld [vmem:[%s234 + $0x8] sm:$0xf]
      %v238 = vld [vmem:[%s234 + $0xc] sm:$0xf]
      %v239 = vld [vmem:[%s234 + $0x10] sm:$0xf]
      %v240 = vld [vmem:[%s234 + $0x14] sm:$0xf]
      %v241 = vld [vmem:[%s234 + $0x18] sm:$0xf]
      %v242 = vld [vmem:[%s234 + $0x1c] sm:$0xf]
      %v243 = vld [vmem:[%s234 + $0x20] sm:$0xf]
      %v244 = vld [vmem:[%s234 + $0x24] sm:$0xf]
      %v245 = vld [vmem:[%s234 + $0x28] sm:$0xf]
      %v246 = vld [vmem:[%s234 + $0x2c] sm:$0xf]
      %v247 = vld [vmem:[%s234 + $0x30] sm:$0xf]
      %v248 = vld [vmem:[%s234 + $0x34] sm:$0xf]
      %v249 = vld [vmem:[%s234 + $0x38] sm:$0xf]
      %v250 = vld [vmem:[%s234 + $0x3c] sm:$0xf]
      %v251 = vld [vmem:[%s234 + $0x40] sm:$0xf]
      %v252 = vld [vmem:[%s234 + $0x44] sm:$0xf]
      %v257 = vunpack.c.l.b16 %v212
      %v258 = vunpack.c.h.b16 %v212
      %v259 = vunpack.c.l.b16 %v213
      %v260 = vunpack.c.h.b16 %v213
      %v261 = vunpack.c.l.b16 %v232
      %v262 = vunpack.c.h.b16 %v232
      %v263 = vunpack.c.l.b16 %v233
      %v264 = vunpack.c.h.b16 %v233
      %v265 = vpack.c.b16 %v259, %v257
      %v266 = vpack.c.b16 %v260, %v258
      %v267 = vpack.c.b16 %v263, %v261
      %v268 = vpack.c.b16 %v264, %v262
      %v289 = vunpack.c.l.b16 %v235
      %v290 = vunpack.c.l.b16 %v236
      %v291 = vunpack.c.l.b16 %v237
      %v292 = vunpack.c.l.b16 %v238
      %v293 = vunpack.c.l.b16 %v239
      %v294 = vunpack.c.l.b16 %v240
      %v295 = vunpack.c.l.b16 %v241
      %v296 = vunpack.c.l.b16 %v242
      %v297 = vunpack.c.l.b16 %v243
      %v298 = vunpack.c.l.b16 %v244
      %v299 = vunpack.c.l.b16 %v245
      %v300 = vunpack.c.l.b16 %v246
      %v301 = vunpack.c.l.b16 %v247
      %v302 = vunpack.c.l.b16 %v248
      %v303 = vunpack.c.l.b16 %v249
      %v304 = vunpack.c.l.b16 %v250
      %v305 = vunpack.c.l.b16 %v251
      %v306 = vunpack.c.l.b16 %v252
      %v307 = vpack.c.b16 %v290, %v289
      %v308 = vpack.c.b16 %v292, %v291
      %v309 = vpack.c.b16 %v294, %v293
      %v310 = vpack.c.b16 %v296, %v295
      %v311 = vpack.c.b16 %v298, %v297
      %v312 = vpack.c.b16 %v300, %v299
      %v313 = vpack.c.b16 %v302, %v301
      %v314 = vpack.c.b16 %v304, %v303
      %v315 = vpack.c.b16 %v306, %v305
      %vm325 = vcmask 130048
      %v327 = vsel %vm325, %v266, 0
      %v330 = vsel %vm325, %v268, 0
      %332 = vmatprep.subr.bf16.mxu0 0
      %333 = vmatpush1.bf16.msra.mxu0 %v307
      %334 = vmatprep.subr.bf16.mxu0 0
      %335 = vmatpush1.bf16.msra.mxu0 %v308
      %336 = vmatprep.subr.bf16.mxu0 0
      %337 = vmatpush1.bf16.msra.mxu0 %v309
      %338 = vmatprep.subr.bf16.mxu0 0
      %339 = vmatpush1.bf16.msra.mxu0 %v310
      %340 = vmatprep.subr.bf16.mxu0 0
      %341 = vmatpush1.bf16.msra.mxu0 %v311
      %342 = vmatprep.subr.bf16.mxu0 0
      %343 = vmatpush1.bf16.msra.mxu0 %v312
      %344 = vmatprep.subr.bf16.mxu0 0
      %345 = vmatpush1.bf16.msra.mxu0 %v313
      %346 = vmatprep.subr.bf16.mxu0 0
      %347 = vmatpush1.bf16.msra.mxu0 %v314
      %348 = vmatprep.subr.bf16.mxu0 0
      %349 = vmatpush1.bf16.msra.mxu0 %v315
      %350 = vmatprep.subr.bf16.mxu0 0
      %351 = vmatpush1.bf16.msra.mxu0 0
      %352 = vmatprep.subr.bf16.mxu0 0
      %353 = vmatpush1.bf16.msra.mxu0 0
      %354 = vmatprep.subr.bf16.mxu0 0
      %355 = vmatpush1.bf16.msra.mxu0 0
      %356 = vmatprep.subr.bf16.mxu0 0
      %357 = vmatpush1.bf16.msra.mxu0 0
      %358 = vmatprep.subr.bf16.mxu0 0
      %359 = vmatpush1.bf16.msra.mxu0 0
      %360 = vmatprep.subr.bf16.mxu0 0
      %361 = vmatpush1.bf16.msra.mxu0 0
      %362 = vmatprep.subr.bf16.mxu0 0
      %363 = vmatpush1.bf16.msra.mxu0 0
      %364 = vmatprep.mubr.bf16.mxu0 %v327
      %365 = vmatmul.mubr.bf16.gmra.mrb[0].mxu0 %v265
      %v366 = vpop.f32.mrb[0].mxu0
      %v367 = vadd.f32 0.0, %v366
      %v368 = vpop.f32.mrb[0].mxu0
      %v369 = vpop.f32.mrb[0].mxu0
      %v370 = vadd.f32 0.0, %v369
      %v371 = vpop.f32.mrb[0].mxu0
      %372 = vmatprep.mubr.bf16.mxu0 %v330
      %373 = vmatmul.mubr.bf16.gmra.mrb[0].mxu0 %v267
      %v374 = vpop.f32.mrb[0].mxu0
      %v375 = vadd.f32 0.0, %v374
      %v376 = vpop.f32.mrb[0].mxu0
      %v377 = vpop.f32.mrb[0].mxu0
      %v378 = vadd.f32 0.0, %v377
      %v379 = vpop.f32.mrb[0].mxu0
      %380 = vdwg.mxu0
      %v383 = vunpack.c.l.b16 %v210
      %v384 = vunpack.c.h.b16 %v210
      %v385 = vunpack.c.l.b16 %v211
      %v386 = vunpack.c.h.b16 %v211
      %v387 = vpack.c.b16 %v385, %v383
      %v388 = vpack.c.b16 %v386, %v384
      %v408 = vunpack.c.l.b16 %v214
      %v409 = vunpack.c.l.b16 %v215
      %v410 = vunpack.c.l.b16 %v216
      %v411 = vunpack.c.l.b16 %v217
      %v412 = vunpack.c.l.b16 %v218
      %v413 = vunpack.c.l.b16 %v219
      %v414 = vunpack.c.l.b16 %v220
      %v415 = vunpack.c.l.b16 %v221
      %v416 = vunpack.c.l.b16 %v222
      %v417 = vunpack.c.l.b16 %v223
      %v418 = vunpack.c.l.b16 %v224
      %v419 = vunpack.c.l.b16 %v225
      %v420 = vunpack.c.l.b16 %v226
      %v421 = vunpack.c.l.b16 %v227
      %v422 = vunpack.c.l.b16 %v228
      %v423 = vunpack.c.l.b16 %v229
      %v424 = vunpack.c.l.b16 %v230
      %v425 = vunpack.c.l.b16 %v231
      %v426 = vpack.c.b16 %v409, %v408
      %v427 = vpack.c.b16 %v411, %v410
      %v428 = vpack.c.b16 %v413, %v412
      %v429 = vpack.c.b16 %v415, %v414
      %v430 = vpack.c.b16 %v417, %v416
      %v431 = vpack.c.b16 %v419, %v418
      %v432 = vpack.c.b16 %v421, %v420
      %v433 = vpack.c.b16 %v423, %v422
      %v434 = vpack.c.b16 %v425, %v424
      %v445 = vsel %vm325, %v388, 0
      %447 = vmatprep.subr.bf16.mxu0 0
      %448 = vmatpush1.bf16.msra.mxu0 %v426
      %449 = vmatprep.subr.bf16.mxu0 0
      %450 = vmatpush1.bf16.msra.mxu0 %v427
      %451 = vmatprep.subr.bf16.mxu0 0
      %452 = vmatpush1.bf16.msra.mxu0 %v428
      %453 = vmatprep.subr.bf16.mxu0 0
      %454 = vmatpush1.bf16.msra.mxu0 %v429
      %455 = vmatprep.subr.bf16.mxu0 0
      %456 = vmatpush1.bf16.msra.mxu0 %v430
      %457 = vmatprep.subr.bf16.mxu0 0
      %458 = vmatpush1.bf16.msra.mxu0 %v431
      %459 = vmatprep.subr.bf16.mxu0 0
      %460 = vmatpush1.bf16.msra.mxu0 %v432
      %461 = vmatprep.subr.bf16.mxu0 0
      %462 = vmatpush1.bf16.msra.mxu0 %v433
      %463 = vmatprep.subr.bf16.mxu0 0
      %464 = vmatpush1.bf16.msra.mxu0 %v434
      %465 = vmatprep.subr.bf16.mxu0 0
      %466 = vmatpush1.bf16.msra.mxu0 0
      %467 = vmatprep.subr.bf16.mxu0 0
      %468 = vmatpush1.bf16.msra.mxu0 0
      %469 = vmatprep.subr.bf16.mxu0 0
      %470 = vmatpush1.bf16.msra.mxu0 0
      %471 = vmatprep.subr.bf16.mxu0 0
      %472 = vmatpush1.bf16.msra.mxu0 0
      %473 = vmatprep.subr.bf16.mxu0 0
      %474 = vmatpush1.bf16.msra.mxu0 0
      %475 = vmatprep.subr.bf16.mxu0 0
      %476 = vmatpush1.bf16.msra.mxu0 0
      %477 = vmatprep.subr.bf16.mxu0 0
      %478 = vmatpush1.bf16.msra.mxu0 0
      %479 = vmatprep.mubr.bf16.mxu0 %v445
      %480 = vmatmul.mubr.bf16.gmra.mrb[0].mxu0 %v387
      %v481 = vpop.f32.mrb[0].mxu0
      %v482 = vadd.f32 %v367, %v481
      %v483 = vpop.f32.mrb[0].mxu0
      %v484 = vpop.f32.mrb[0].mxu0
      %v485 = vadd.f32 %v370, %v484
      %v486 = vpop.f32.mrb[0].mxu0
      %487 = vmatprep.mubr.bf16.mxu0 %v327
      %488 = vmatmul.mubr.bf16.gmra.mrb[0].mxu0 %v265
      %v489 = vpop.f32.mrb[0].mxu0
      %v490 = vadd.f32 %v375, %v489
      %v491 = vpop.f32.mrb[0].mxu0
      %v492 = vpop.f32.mrb[0].mxu0
      %v493 = vadd.f32 %v378, %v492
      %v494 = vpop.f32.mrb[0].mxu0
      %495 = vdwg.mxu0
      %v496 = vld [vmem:[%s199 + $0x20] sm:$0xff]
      %v497 = vld [vmem:[%s199 + $0x28] sm:$0xff]
      %v498 = vld [vmem:[%s199 + $0x30] sm:$0xff]
      %v499 = vld [vmem:[%s199 + $0x38] sm:$0xff]
      %s500 = scalar_lea.vmem %s1, 144
      %v501 = vld [vmem:[%s500] sm:$0xf]
      %v502 = vld [vmem:[%s500 + $0x4] sm:$0xf]
      %v503 = vld [vmem:[%s500 + $0x8] sm:$0xf]
      %v504 = vld [vmem:[%s500 + $0xc] sm:$0xf]
      %v505 = vld [vmem:[%s500 + $0x10] sm:$0xf]
      %v506 = vld [vmem:[%s500 + $0x14] sm:$0xf]
      %v507 = vld [vmem:[%s500 + $0x18] sm:$0xf]
      %v508 = vld [vmem:[%s500 + $0x1c] sm:$0xf]
      %v509 = vld [vmem:[%s500 + $0x20] sm:$0xf]
      %v510 = vld [vmem:[%s500 + $0x24] sm:$0xf]
      %v511 = vld [vmem:[%s500 + $0x28] sm:$0xf]
      %v512 = vld [vmem:[%s500 + $0x2c] sm:$0xf]
      %v513 = vld [vmem:[%s500 + $0x30] sm:$0xf]
      %v514 = vld [vmem:[%s500 + $0x34] sm:$0xf]
      %v515 = vld [vmem:[%s500 + $0x38] sm:$0xf]
      %v516 = vld [vmem:[%s500 + $0x3c] sm:$0xf]
      %v517 = vld [vmem:[%s500 + $0x40] sm:$0xf]
      %v518 = vld [vmem:[%s500 + $0x44] sm:$0xf]
      %v523 = vunpack.c.l.b16 %v496
      %v524 = vunpack.c.h.b16 %v496
      %v525 = vunpack.c.l.b16 %v497
      %v526 = vunpack.c.h.b16 %v497
      %v527 = vunpack.c.l.b16 %v498
      %v528 = vunpack.c.h.b16 %v498
      %v529 = vunpack.c.l.b16 %v499
      %v530 = vunpack.c.h.b16 %v499
      %v531 = vpack.c.b16 %v525, %v523
      %v532 = vpack.c.b16 %v526, %v524
      %v533 = vpack.c.b16 %v529, %v527
      %v534 = vpack.c.b16 %v530, %v528
      %v555 = vunpack.c.l.b16 %v501
      %v556 = vunpack.c.l.b16 %v502
      %v557 = vunpack.c.l.b16 %v503
      %v558 = vunpack.c.l.b16 %v504
      %v559 = vunpack.c.l.b16 %v505
      %v560 = vunpack.c.l.b16 %v506
      %v561 = vunpack.c.l.b16 %v507
      %v562 = vunpack.c.l.b16 %v508
      %v563 = vunpack.c.l.b16 %v509
      %v564 = vunpack.c.l.b16 %v510
      %v565 = vunpack.c.l.b16 %v511
      %v566 = vunpack.c.l.b16 %v512
      %v567 = vunpack.c.l.b16 %v513
      %v568 = vunpack.c.l.b16 %v514
      %v569 = vunpack.c.l.b16 %v515
      %v570 = vunpack.c.l.b16 %v516
      %v571 = vunpack.c.l.b16 %v517
      %v572 = vunpack.c.l.b16 %v518
      %v573 = vpack.c.b16 %v556, %v555
      %v574 = vpack.c.b16 %v558, %v557
      %v575 = vpack.c.b16 %v560, %v559
      %v576 = vpack.c.b16 %v562, %v561
      %v577 = vpack.c.b16 %v564, %v563
      %v578 = vpack.c.b16 %v566, %v565
      %v579 = vpack.c.b16 %v568, %v567
      %v580 = vpack.c.b16 %v570, %v569
      %v581 = vpack.c.b16 %v572, %v571
      %v592 = vsel %vm325, %v532, 0
      %v595 = vsel %vm325, %v534, 0
      %597 = vmatprep.subr.bf16.mxu0 0
      %598 = vmatpush1.bf16.msra.mxu0 %v573
      %599 = vmatprep.subr.bf16.mxu0 0
      %600 = vmatpush1.bf16.msra.mxu0 %v574
      %601 = vmatprep.subr.bf16.mxu0 0
      %602 = vmatpush1.bf16.msra.mxu0 %v575
      %603 = vmatprep.subr.bf16.mxu0 0
      %604 = vmatpush1.bf16.msra.mxu0 %v576
      %605 = vmatprep.subr.bf16.mxu0 0
      %606 = vmatpush1.bf16.msra.mxu0 %v577
      %607 = vmatprep.subr.bf16.mxu0 0
      %608 = vmatpush1.bf16.msra.mxu0 %v578
      %609 = vmatprep.subr.bf16.mxu0 0
      %610 = vmatpush1.bf16.msra.mxu0 %v579
      %611 = vmatprep.subr.bf16.mxu0 0
      %612 = vmatpush1.bf16.msra.mxu0 %v580
      %613 = vmatprep.subr.bf16.mxu0 0
      %614 = vmatpush1.bf16.msra.mxu0 %v581
      %615 = vmatprep.subr.bf16.mxu0 0
      %616 = vmatpush1.bf16.msra.mxu0 0
      %617 = vmatprep.subr.bf16.mxu0 0
      %618 = vmatpush1.bf16.msra.mxu0 0
      %619 = vmatprep.subr.bf16.mxu0 0
      %620 = vmatpush1.bf16.msra.mxu0 0
      %621 = vmatprep.subr.bf16.mxu0 0
      %622 = vmatpush1.bf16.msra.mxu0 0
      %623 = vmatprep.subr.bf16.mxu0 0
      %624 = vmatpush1.bf16.msra.mxu0 0
      %625 = vmatprep.subr.bf16.mxu0 0
      %626 = vmatpush1.bf16.msra.mxu0 0
      %627 = vmatprep.subr.bf16.mxu0 0
      %628 = vmatpush1.bf16.msra.mxu0 0
      %629 = vmatprep.mubr.bf16.mxu0 %v592
      %630 = vmatmul.mubr.bf16.gmra.mrb[0].mxu0 %v531
      %v631 = vpop.f32.mrb[0].mxu0
      %v632 = vadd.f32 0.0, %v631
      %v633 = vpop.f32.mrb[0].mxu0
      %v634 = vpop.f32.mrb[0].mxu0
      %v635 = vadd.f32 0.0, %v634
      %v636 = vpop.f32.mrb[0].mxu0
      %637 = vmatprep.mubr.bf16.mxu0 %v595
      %638 = vmatmul.mubr.bf16.gmra.mrb[0].mxu0 %v533
      %v639 = vpop.f32.mrb[0].mxu0
      %v640 = vadd.f32 0.0, %v639
      %v641 = vpop.f32.mrb[0].mxu0
      %v642 = vpop.f32.mrb[0].mxu0
      %v643 = vadd.f32 0.0, %v642
      %v644 = vpop.f32.mrb[0].mxu0
      %645 = vdwg.mxu0
      %v646 = vadd.f32 %v482, %v632
      %v647 = vadd.f32 %v485, %v635
      %v648 = vadd.f32 %v490, %v640
      %v649 = vadd.f32 %v493, %v643
      %v650 = vld [vmem:[%s2] sm:$0x1]
      %v652 = vlaneseq
      %v653 = vshrl.u32 %v652, 7
      %v654 = vsub.s32 0, %v653
      %v655 = vrot.slane %v650, %v654
      %v657 = vadd.f32 %v646, %v655
      %v658 = vadd.f32 %v647, %v655
      %v659 = vadd.f32 %v648, %v655
      %v660 = vadd.f32 %v649, %v655
      %v661 = vpack.c.bf16 %v658, %v657
      %v662 = vpack.c.bf16 %v660, %v659
      %v665 = vunpack.c.l.b16 %v661
      %v666 = vunpack.c.h.b16 %v661
      %v667 = vunpack.c.l.b16 %v662
      %v668 = vunpack.c.h.b16 %v662
      %v669 = vpack.c.b16 %v665, %v665
      %v670 = vpack.c.b16 %v666, %v666
      %v671 = vpack.c.b16 %v667, %v667
      %v672 = vpack.c.b16 %v668, %v668
      %677 = vst [vmem:[%s204] sm:$0xf] %v669
      %678 = vst [vmem:[%s204 + $0x4] sm:$0xf] %v670
      %679 = vst [vmem:[%s204 + $0x8] sm:$0xf] %v671
      %680 = vst [vmem:[%s204 + $0xc] sm:$0xf] %v672
      %v681 = vadd.f32 %v657, %v658
      %v682 = vadd.f32 %v681, %v659
      %v683 = vadd.f32 %v682, %v660
      %v684 = vrot.slane %v683, 4
      %v685 = vadd.f32 %v683, %v684
      %v686 = vrot.slane %v685, 2
      %v687 = vadd.f32 %v685, %v686
      %v688 = vrot.slane %v687, 1
      %v689 = vadd.f32 %v687, %v688
      %v690 = vmul.f32 %v657, %v657
      %v691 = vmul.f32 %v658, %v658
      %v692 = vmul.f32 %v659, %v659
      %v693 = vmul.f32 %v660, %v660
      %v694 = vadd.f32 %v690, %v691
      %v695 = vadd.f32 %v694, %v692
      %v696 = vadd.f32 %v695, %v693
      %v697 = vrot.slane %v696, 4
      %v698 = vadd.f32 %v696, %v697
      %v699 = vrot.slane %v698, 2
      %v700 = vadd.f32 %v698, %v699
      %v701 = vrot.slane %v700, 1
      %v702 = vadd.f32 %v700, %v701
      %vm703 = vcmask 1040384
      %v704 = vsel %vm703, %v689, %v702
      %705 = vst [vmem:[%s208] sm:$0x3] %v704
      %p706 = scmp.lt.s32.totalorder %s16, 1
      %s707 = scalar_select %p706, %s16, 1
      %s708 = smul.addr %s707, 4
      %s709 = smul.addr %s708, 4
      %s710 = scalar_lea.vmem %s3, %s709
      %p711 = scmp.lt.s32.totalorder %s16, 1
      %s712 = scalar_select %p711, %s16, 1
      %s713 = smul.addr %s712, 2
      %s714 = scalar_lea.vmem %s4, %s713
      // Predicated region
      $region33: #{encoder_forward.6} parent=31 // pred_check
        %p715 = pneg %p102
      $region34: #{encoder_forward.6} parent=31 // pred_check_branch
        %717 = sbr.rel (%p715) target = $region36
      $region35: #{encoder_forward.6} parent=31 // pred_region
        _
      $region36: #{encoder_forward.6} parent=31 // pred_fallthru
        _
      // Predicated region
      $region37: #{encoder_forward.6} parent=31 // pred_check
        %p718 = pneg %p128
      $region38: #{encoder_forward.6} parent=31 // pred_check_branch
        %720 = sbr.rel (%p718) target = $region40
      $region39: #{encoder_forward.6} parent=31 // pred_region
        _
      $region40: #{encoder_forward.6} parent=31 // pred_fallthru
        _
    $region32: #{encoder_forward.6} parent=5 // pred_fallthru
      _
    %p721 = scmp.le.s32.totalorder 2, %s11
    // Predicated region
    $region41: #{encoder_forward.6} parent=5 // pred_check
      %p722 = pneg %p721
    $region42: #{encoder_forward.6} parent=5 // pred_check_branch
      %724 = sbr.rel (%p722) target = $region44
    $region43: #{encoder_forward.6} parent=5 // pred_region
      %s725 = ssub.s32 %s11, 2
      // Predicated region
      $region45: #{encoder_forward.6} parent=43 // pred_check
        %p726 = pneg %p108
      $region46: #{encoder_forward.6} parent=43 // pred_check_branch
        %728 = sbr.rel (%p726) target = $region48
      $region47: #{encoder_forward.6} parent=43 // pred_region
        %p729 = scmp.lt.s32.totalorder %s17, 1
        %s730 = scalar_select %p729, %s17, 1
        %s731 = smul.addr %s730, 4
        %s732 = smul.addr %s731, 4
        %s733 = scalar_lea.vmem %s3, %s732
      $region48: #{encoder_forward.6} parent=43 // pred_fallthru
        _
      // Predicated region
      $region49: #{encoder_forward.6} parent=43 // pred_check
        %p734 = pneg %p134
      $region50: #{encoder_forward.6} parent=43 // pred_check_branch
        %736 = sbr.rel (%p734) target = $region52
      $region51: #{encoder_forward.6} parent=43 // pred_region
        %p737 = scmp.lt.s32.totalorder %s17, 1
        %s738 = scalar_select %p737, %s17, 1
        %s739 = smul.addr %s738, 2
        %s740 = scalar_lea.vmem %s4, %s739
      $region52: #{encoder_forward.6} parent=43 // pred_fallthru
        _
    $region44: #{encoder_forward.6} parent=5 // pred_fallthru
      _
  $region6: #{encoder_forward.6} parent=0 // loop_footer
    %s15 = sadd.s32 1, %s11
  $region7: #{encoder_forward.6} parent=0 // loop_footer_branch
    %10 = sbr.rel target = $region3
  $region8: #{encoder_forward.6} parent=0 // loop_exit
    _

// kernel: encoder_forward.7
$region0: #{encoder_forward.7}
  #allocation0 [shape = 'u32[]', space=smem, size = 0x4, offset = 0x4, fixed_abs, tag = 'smem constant byte address 0x4 - core index']
  #allocation1 [shape = 'u32[144,128]{1,0:T(1,128)}', space=vmem, size = 0x12000, scoped, tag = 'internal scratch']
  %s0 = inlined_call_operand.vmem [shape: bf16[64,128], index: 0, kind: input, shape index: {}]
  %s1 = inlined_call_operand.vmem [shape: f32[1,128], index: 1, kind: input, shape index: {}]
  %s2 = inlined_call_operand.vmem [shape: f32[1,128], index: 2, kind: input, shape index: {}]
  %s3 = inlined_call_operand.vmem [shape: bf16[64,128], index: 3, kind: output, shape index: {}]
  %s4 = sld [smem:[#allocation0]]
  $region22: #{encoder_forward.7} parent=0
    _
  %s6 = ssub.s32 1, %s4
  %s7 = scalar_select 0, %s6, %s4
  // Predicated region
  $region2: #{encoder_forward.7} parent=0 // pred_check
    _
  $region3: #{encoder_forward.7} parent=0 // pred_check_branch
    %9 = sbr.rel (0) target = $region5
  $region4: #{encoder_forward.7} parent=0 // pred_region
    _
  $region5: #{encoder_forward.7} parent=0 // pred_fallthru
    _
  // Predicated region
  $region6: #{encoder_forward.7} parent=0 // pred_check
    _
  $region7: #{encoder_forward.7} parent=0 // pred_check_branch
    %11 = sbr.rel (0) target = $region9
  $region8: #{encoder_forward.7} parent=0 // pred_region
    _
  $region9: #{encoder_forward.7} parent=0 // pred_fallthru
    _
  // Predicated region
  $region10: #{encoder_forward.7} parent=0 // pred_check
    _
  $region11: #{encoder_forward.7} parent=0 // pred_check_branch
    %13 = sbr.rel (0) target = $region13
  $region12: #{encoder_forward.7} parent=0 // pred_region
    _
  $region13: #{encoder_forward.7} parent=0 // pred_fallthru
    _
  %v14 = vld [vmem:[%s0] sm:$0xf]
  %v15 = vld [vmem:[%s0 + $0x4] sm:$0xf]
  %v16 = vld [vmem:[%s0 + $0x8] sm:$0xf]
  %v17 = vld [vmem:[%s0 + $0xc] sm:$0xf]
  %v18 = vld [vmem:[%s0 + $0x10] sm:$0xf]
  %v19 = vld [vmem:[%s0 + $0x14] sm:$0xf]
  %v20 = vld [vmem:[%s0 + $0x18] sm:$0xf]
  %v21 = vld [vmem:[%s0 + $0x1c] sm:$0xf]
  %v22 = vunpack.c.l.bf16 %v14
  %v23 = vunpack.c.l.bf16 %v15
  %v24 = vunpack.c.l.bf16 %v16
  %v25 = vunpack.c.l.bf16 %v17
  %v26 = vunpack.c.l.bf16 %v18
  %v27 = vunpack.c.l.bf16 %v19
  %v28 = vunpack.c.l.bf16 %v20
  %v29 = vunpack.c.l.bf16 %v21
  %v30 = vld [vmem:[%s1] sm:$0x1]
  %v32 = vlaneseq
  %v33 = vshrl.u32 %v32, 7
  %v34 = vsub.s32 0, %v33
  %v35 = vrot.slane %v30, %v34
  %v37 = vmul.f32 %v22, %v35
  %v38 = vmul.f32 %v23, %v35
  %v39 = vmul.f32 %v24, %v35
  %v40 = vmul.f32 %v25, %v35
  %v41 = vmul.f32 %v26, %v35
  %v42 = vmul.f32 %v27, %v35
  %v43 = vmul.f32 %v28, %v35
  %v44 = vmul.f32 %v29, %v35
  %v45 = vld [vmem:[%s2] sm:$0x1]
  %v47 = vlaneseq
  %v48 = vshrl.u32 %v47, 7
  %v49 = vsub.s32 0, %v48
  %v50 = vrot.slane %v45, %v49
  %v52 = vadd.f32 %v37, %v50
  %v53 = vadd.f32 %v38, %v50
  %v54 = vadd.f32 %v39, %v50
  %v55 = vadd.f32 %v40, %v50
  %v56 = vadd.f32 %v41, %v50
  %v57 = vadd.f32 %v42, %v50
  %v58 = vadd.f32 %v43, %v50
  %v59 = vadd.f32 %v44, %v50
  %v60 = vpack.c.bf16 %v53, %v52
  %v61 = vpack.c.bf16 %v55, %v54
  %v62 = vpack.c.bf16 %v57, %v56
  %v63 = vpack.c.bf16 %v59, %v58
  %v68 = vunpack.c.l.b16 %v60
  %v69 = vunpack.c.h.b16 %v60
  %v70 = vunpack.c.l.b16 %v61
  %v71 = vunpack.c.h.b16 %v61
  %v72 = vunpack.c.l.b16 %v62
  %v73 = vunpack.c.h.b16 %v62
  %v74 = vunpack.c.l.b16 %v63
  %v75 = vunpack.c.h.b16 %v63
  %v76 = vpack.c.b16 %v68, %v68
  %v77 = vpack.c.b16 %v69, %v69
  %v78 = vpack.c.b16 %v70, %v70
  %v79 = vpack.c.b16 %v71, %v71
  %v80 = vpack.c.b16 %v72, %v72
  %v81 = vpack.c.b16 %v73, %v73
  %v82 = vpack.c.b16 %v74, %v74
  %v83 = vpack.c.b16 %v75, %v75
  %92 = vst [vmem:[%s3] sm:$0xf] %v76
  %93 = vst [vmem:[%s3 + $0x4] sm:$0xf] %v77
  %94 = vst [vmem:[%s3 + $0x8] sm:$0xf] %v78
  %95 = vst [vmem:[%s3 + $0xc] sm:$0xf] %v79
  %96 = vst [vmem:[%s3 + $0x10] sm:$0xf] %v80
  %97 = vst [vmem:[%s3 + $0x14] sm:$0xf] %v81
  %98 = vst [vmem:[%s3 + $0x18] sm:$0xf] %v82
  %99 = vst [vmem:[%s3 + $0x1c] sm:$0xf] %v83
  // Predicated region
  $region14: #{encoder_forward.7} parent=0 // pred_check
    _
  $region15: #{encoder_forward.7} parent=0 // pred_check_branch
    %101 = sbr.rel (0) target = $region17
  $region16: #{encoder_forward.7} parent=0 // pred_region
    _
  $region17: #{encoder_forward.7} parent=0 // pred_fallthru
    _
  // Predicated region
  $region18: #{encoder_forward.7} parent=0 // pred_check
    _
  $region19: #{encoder_forward.7} parent=0 // pred_check_branch
    %103 = sbr.rel (0) target = $region21
  $region20: #{encoder_forward.7} parent=0 // pred_region
    _
  $region21: #{encoder_forward.7} parent=0 // pred_fallthru
    _

</llo_original>
